<compile_context>
chip_gen: v7x
topology: tpu7x:2x2x1
jax: 0.10.0
libtpu: 0.0.40
codegen_flags: <defaults>
</compile_context>

<pallas_src>
import functools
import math

import jax
import jax.numpy as jnp
from jax import lax
from jax.experimental import pallas as pl
from jax.experimental.pallas import tpu as pltpu

# ---- config (deterministic, GeoTransformer coarse-matching defaults) ----
POS_MARGIN = 0.1    # coarse_circle_loss_positive_margin
NEG_MARGIN = 1.4    # coarse_circle_loss_negative_margin
POS_OPTIMAL = 0.1   # coarse_circle_loss_positive_optimal
NEG_OPTIMAL = 1.4   # coarse_circle_loss_negative_optimal
LOG_SCALE = 24.0    # coarse_circle_loss_log_scale
POS_THRESH = 0.1    # coarse_circle_loss_positive_threshold

SQRT_POS_THRESH = math.sqrt(POS_THRESH)   # threshold applied to sqrt(overlap)

# Fixed logsumexp shifts.  Analytic logit bounds for normalized feats:
#   pos <= 24*(2-0.1)*(2-0.1) = 86.64 ; neg <= 24*1.4*1.4 = 47.04
# exp(86.64-40)=1.8e20 and exp(47.04-24)=1.0e10 cannot overflow even summed
# over huge tiles, while masked entries exp(0-40)=4.2e-18 / exp(0-24)=3.8e-11
# stay comfortably normal f32.
POS_SHIFT = 40.0
NEG_SHIFT = 24.0
EXP_NEG_POS_SHIFT = math.exp(-POS_SHIFT)  # contribution of one padded entry
EXP_NEG_NEG_SHIFT = math.exp(-NEG_SHIFT)
TINY = 1e-30                               # floor before logs (defensive only)


def _round_up(x, m):
    return (x + m - 1) // m * m


def _softplus(x):
    # numerically-stable softplus without log1p (matches F.softplus to f32)
    return jnp.maximum(x, 0.0) + jnp.log(1.0 + jnp.exp(-jnp.abs(x)))


def _coarse_matching_loss_kernel(ref_ref, srcT_ref, refidx_ref, srcidx_ref,
                                 sqovl_ref, out_ref,
                                 b_scr, col_pos_sum, col_neg_sum,
                                 col_pos_cnt, col_neg_cnt,
                                 row_loss_acc, row_cnt_acc,
                                 *, n_valid, m_valid, n_pad):
    i = pl.program_id(0)
    tile_n = ref_ref.shape[0]
    m_pad = srcT_ref.shape[1]

    @pl.when(i == 0)
    def _init():
        # One-hot scatter operand, built once: B[j, c] = sqrt(ovl_j) if
        # src_idx_j == c else 0.  Padded pairs carry src_idx = -1 -> all zero.
        col_ids = lax.broadcasted_iota(jnp.int32, b_scr.shape, 1)
        b_scr[...] = jnp.where(col_ids == srcidx_ref[...], sqovl_ref[...], 0.0)
        col_pos_sum[...] = jnp.zeros_like(col_pos_sum)
        col_neg_sum[...] = jnp.zeros_like(col_neg_sum)
        col_pos_cnt[...] = jnp.zeros_like(col_pos_cnt)
        col_neg_cnt[...] = jnp.zeros_like(col_neg_cnt)
        row_loss_acc[...] = jnp.zeros_like(row_loss_acc)
        row_cnt_acc[...] = jnp.zeros_like(row_cnt_acc)

    # ---- feature distances (MXU; src pre-transposed -> no per-step XLU) ----
    xy = lax.dot_general(ref_ref[...], srcT_ref[...],
                         (((1,), (0,)), ((), ())),
                         preferred_element_type=jnp.float32)    # (tile_n, m_pad)
    # pairwise_distance(..., normalized=True): sqrt(clamp(2 - 2 x.y, 0))
    feat_dists = jnp.sqrt(jnp.maximum(2.0 - 2.0 * xy, 0.0))

    # ---- sparse gt -> dense sqrt(overlap) tile via one-hot MXU scatter ----
    row_ids = i * tile_n + lax.broadcasted_iota(jnp.int32, (tile_n, 1), 0)
    a_onehot = (refidx_ref[...] == row_ids).astype(jnp.float32)  # (tile_n, k_pad)
    scat = lax.dot_general(a_onehot, b_scr[...],
                           (((1,), (0,)), ((), ())),
                           preferred_element_type=jnp.float32)   # sqrt(overlaps)

    pos_f = (scat > SQRT_POS_THRESH).astype(jnp.float32)
    neg_f = (scat == 0.0).astype(jnp.float32)

    # circle-loss logits; masked / padded entries give exactly 0 -> exp(0)=1
    # terms, exactly as in the reference logsumexp.
    pos_w = jnp.maximum(feat_dists - POS_OPTIMAL, 0.0) * (scat * pos_f)
    neg_w = jnp.maximum(NEG_OPTIMAL - feat_dists, 0.0) * neg_f
    pos_logits = LOG_SCALE * (feat_dists - POS_MARGIN) * pos_w
    neg_logits = LOG_SCALE * (NEG_MARGIN - feat_dists) * neg_w

    # one exp per matrix, shared by the row and column logsumexps
    exp_pos = jnp.exp(pos_logits - POS_SHIFT)
    exp_neg = jnp.exp(neg_logits - NEG_SHIFT)

    # ---- row (ref-anchor) losses for this tile ----
    row_pos_sum = jnp.sum(exp_pos, axis=1, keepdims=True)
    row_neg_sum = jnp.sum(exp_neg, axis=1, keepdims=True)
    row_pos_cnt = jnp.sum(pos_f, axis=1, keepdims=True)
    row_neg_cnt = jnp.sum(neg_f, axis=1, keepdims=True)

    n_col_pad = m_pad - m_valid
    if n_col_pad:
        # every zero-padded src column contributes exactly exp(0 - SHIFT) to
        # both sums and one fake "negative" to the count -> subtract constants.
        row_pos_sum = jnp.maximum(row_pos_sum - n_col_pad * EXP_NEG_POS_SHIFT, TINY)
        row_neg_sum = jnp.maximum(row_neg_sum - n_col_pad * EXP_NEG_NEG_SHIFT, TINY)
        row_neg_cnt = row_neg_cnt - float(n_col_pad)

    loss_row = _softplus((POS_SHIFT + jnp.log(row_pos_sum)) +
                         (NEG_SHIFT + jnp.log(row_neg_sum))) * (1.0 / LOG_SCALE)
    row_f = ((row_pos_cnt > 0.0) & (row_neg_cnt > 0.0)).astype(jnp.float32)
    row_loss_acc[...] += loss_row * row_f          # vector adds, no per-step reduce
    row_cnt_acc[...] += row_f

    # ---- streaming column (src-anchor) accumulators: 8-sublane VALU adds ----
    def _fold8(x):
        if tile_n == 8:
            return x
        return x.reshape(tile_n // 8, 8, m_pad).sum(axis=0)

    col_pos_sum[...] += _fold8(exp_pos)
    col_neg_sum[...] += _fold8(exp_neg)
    col_pos_cnt[...] += _fold8(pos_f)
    col_neg_cnt[...] += _fold8(neg_f)

    @pl.when(i == pl.num_programs(0) - 1)
    def _finalize():
        cps = jnp.sum(col_pos_sum[...], axis=0, keepdims=True)   # 8 -> 1, once
        cns = jnp.sum(col_neg_sum[...], axis=0, keepdims=True)
        cpc = jnp.sum(col_pos_cnt[...], axis=0, keepdims=True)
        cnc = jnp.sum(col_neg_cnt[...], axis=0, keepdims=True)

        n_row_pad = n_pad - n_valid
        if n_row_pad:
            # every zero-padded ref row contributes exp(0 - SHIFT) to every
            # column sum and one fake negative to every column count.
            cps = jnp.maximum(cps - n_row_pad * EXP_NEG_POS_SHIFT, TINY)
            cns = jnp.maximum(cns - n_row_pad * EXP_NEG_NEG_SHIFT, TINY)
            cnc = cnc - float(n_row_pad)

        loss_col = _softplus((POS_SHIFT + jnp.log(cps)) +
                             (NEG_SHIFT + jnp.log(cns))) * (1.0 / LOG_SCALE)
        col_f = ((cpc > 0.0) & (cnc > 0.0)).astype(jnp.float32)
        loss_c_num = jnp.sum(loss_col * col_f, axis=1, keepdims=True)
        col_cnt = jnp.sum(col_f, axis=1, keepdims=True)
        loss_r_num = jnp.sum(row_loss_acc[...], axis=0, keepdims=True)
        row_cnt = jnp.sum(row_cnt_acc[...], axis=0, keepdims=True)

        out_ref[...] = 0.5 * (loss_r_num / row_cnt + loss_c_num / col_cnt)


@functools.partial(jax.jit, static_argnames=("tile_n",))
def coarse_matching_loss(ref_feats, src_feats, gt_node_corr_indices,
                         gt_node_corr_overlaps, *, tile_n=None):
    n, c = ref_feats.shape
    m, _ = src_feats.shape
    k = gt_node_corr_indices.shape[0]

    m_pad = _round_up(max(m, 1), 128)
    k_pad = _round_up(max(k, 1), 128)
    feat_isize = ref_feats.dtype.itemsize

    # ---- generation-aware tiling / VMEM budget ----
    try:
        vmem_cap = int(pltpu.get_tpu_info().vmem_capacity_bytes)
    except Exception:
        vmem_cap = 64 * 1024 * 1024
    if vmem_cap >= 128 * 1024 * 1024:            # v5e / v6e: big tiles, ~100 MiB
        vmem_budget = 100 * 1024 * 1024
        candidates = (1024, 512, 256, 128, 64, 32, 16, 8)
    else:                                        # v7x: 64 MiB physical -> 52 MiB cap
        vmem_budget = 52 * 1024 * 1024
        candidates = (256, 128, 64, 32, 16, 8) if m_pad < 4096 else (128, 64, 32, 16, 8)

    n8 = _round_up(max(n, 1), 8)
    fixed_bytes = (k_pad * m_pad * 4                 # resident one-hot operand (scratch)
                   + c * m_pad * feat_isize          # resident src^T block
                   + 4 * 8 * m_pad * 4               # column accumulators
                   + 6 * k_pad * 4)                  # gt vectors
    if tile_n is None:
        tile_n = 8
        for t in candidates:
            if t > n8:
                continue
            live = (fixed_bytes + 2 * t * c * feat_isize + 2 * t * k_pad * 4
                    + 7 * t * m_pad * 4 + 2 * t * 4)
            if live <= vmem_budget:
                tile_n = t
                break
    tile_n = max(8, min(_round_up(int(tile_n), 8), n8))
    n_pad = _round_up(n, tile_n)

    # ---- pad / lay out inputs (no dense N x M overlaps matrix any more) ----
    ref_p = ref_feats if n_pad == n else jnp.pad(ref_feats, ((0, n_pad - n), (0, 0)))
    src_p = src_feats if m_pad == m else jnp.pad(src_feats, ((0, m_pad - m), (0, 0)))
    srcT_p = src_p.T                                  # (c, m_pad), one-off transpose

    gt_ref = gt_node_corr_indices[:, 0].astype(jnp.int32)
    gt_src = gt_node_corr_indices[:, 1].astype(jnp.int32)
    sq_ovl = jnp.sqrt(gt_node_corr_overlaps.astype(jnp.float32))   # sqrt on k scalars
    refidx_p = jnp.full((1, k_pad), -1, jnp.int32).at[0, :k].set(gt_ref)
    srcidx_p = jnp.full((k_pad, 1), -1, jnp.int32).at[:k, 0].set(gt_src)
    sqovl_p = jnp.zeros((k_pad, 1), jnp.float32).at[:k, 0].set(sq_ovl)

    grid = (n_pad // tile_n,)
    cost = pl.CostEstimate(
        flops=2 * n_pad * m_pad * (c + k_pad) + 30 * n_pad * m_pad,
        transcendentals=3 * n_pad * m_pad,
        bytes_accessed=(n_pad + m_pad) * c * feat_isize + 3 * k_pad * 4 + 4,
    )

    kernel = functools.partial(_coarse_matching_loss_kernel,
                               n_valid=n, m_valid=m, n_pad=n_pad)

    out = pl.pallas_call(
        kernel,
        out_shape=jax.ShapeDtypeStruct((1, 1), jnp.float32),
        grid=grid,
        in_specs=[pl.BlockSpec((tile_n, c), lambda i: (i, 0)),
                  pl.BlockSpec((c, m_pad), lambda i: (0, 0)),
                  pl.BlockSpec((1, k_pad), lambda i: (0, 0)),
                  pl.BlockSpec((k_pad, 1), lambda i: (0, 0)),
                  pl.BlockSpec((k_pad, 1), lambda i: (0, 0))],
        out_specs=pl.BlockSpec((1, 1), lambda i: (0, 0)),
        scratch_shapes=[pltpu.VMEM((k_pad, m_pad), jnp.float32),  # one-hot scatter RHS
                        pltpu.VMEM((8, m_pad), jnp.float32),      # col pos exp-sum
                        pltpu.VMEM((8, m_pad), jnp.float32),      # col neg exp-sum
                        pltpu.VMEM((8, m_pad), jnp.float32),      # col pos count
                        pltpu.VMEM((8, m_pad), jnp.float32),      # col neg count
                        pltpu.VMEM((tile_n, 1), jnp.float32),     # row loss accumulator
                        pltpu.VMEM((tile_n, 1), jnp.float32)],    # row count accumulator
        compiler_params=pltpu.CompilerParams(
            dimension_semantics=("arbitrary",),
            vmem_limit_bytes=int(vmem_budget)),
        cost_estimate=cost,
    )(ref_p, srcT_p, refidx_p, srcidx_p, sqovl_p)
    return out[0, 0]


def _reference_loss(ref_feats, src_feats, gt_idx, gt_ovl):
    n, _ = ref_feats.shape
    m, _ = src_feats.shape
    overlaps = jnp.zeros((n, m), jnp.float32).at[gt_idx[:, 0], gt_idx[:, 1]].set(gt_ovl)
    feat_dists = jnp.sqrt(jnp.maximum(2.0 - 2.0 * ref_feats @ src_feats.T, 0.0))
    pos = overlaps > POS_THRESH
    neg = overlaps == 0.0
    pos_scales = jnp.sqrt(overlaps * pos)
    row_m = (pos.sum(1) > 0) & (neg.sum(1) > 0)
    col_m = (pos.sum(0) > 0) & (neg.sum(0) > 0)
    pos_w = jnp.maximum(feat_dists - 1e5 * (~pos) - POS_OPTIMAL, 0.0) * pos_scales
    neg_w = jnp.maximum(NEG_OPTIMAL - (feat_dists + 1e5 * (~neg)), 0.0)
    pl_ = LOG_SCALE * (feat_dists - POS_MARGIN) * pos_w
    nl_ = LOG_SCALE * (NEG_MARGIN - feat_dists) * neg_w
    lr = jax.nn.softplus(jax.nn.logsumexp(pl_, 1) + jax.nn.logsumexp(nl_, 1)) / LOG_SCALE
    lc = jax.nn.softplus(jax.nn.logsumexp(pl_, 0) + jax.nn.logsumexp(nl_, 0)) / LOG_SCALE
    return 0.5 * (jnp.sum(lr * row_m) / jnp.sum(row_m) +
                  jnp.sum(lc * col_m) / jnp.sum(col_m))


if __name__ == "__main__":
    key = jax.random.PRNGKey(0)
    n_ref, n_src, c, k = 60, 49, 32, 16       # exercises row & column padding
    k1, k2, k3, k4, k5 = jax.random.split(key, 5)

    ref = jax.random.normal(k1, (n_ref, c), jnp.float32)
    src = jax.random.normal(k2, (n_src, c), jnp.float32)
    ref = ref / jnp.linalg.norm(ref, axis=-1, keepdims=True)   # normalized=True
    src = src / jnp.linalg.norm(src, axis=-1, keepdims=True)

    # unique gt correspondences (avoids duplicate-scatter ambiguity); overlaps
    # kept away from the 0.1 threshold so thresholding is unambiguous.
    ref_idx = jax.random.permutation(k3, n_ref)[:k]
    src_idx = jax.random.permutation(k4, n_src)[:k]
    gt_node_corr_indices = jnp.stack([ref_idx, src_idx], axis=1).astype(jnp.int32)
    gt_node_corr_overlaps = jax.random.uniform(k5, (k,), jnp.float32, 0.2, 0.9)

    # tile_n=32 -> 2 row tiles: exercises the streaming column accumulators,
    # the padded-M (49 -> 128) and padded-N (60 -> 64) analytic corrections.
    loss = coarse_matching_loss(ref, src, gt_node_corr_indices,
                                gt_node_corr_overlaps, tile_n=32)
    jax.block_until_ready(loss)

    ref_loss = _reference_loss(ref, src, gt_node_corr_indices, gt_node_corr_overlaps)
    assert jnp.isfinite(loss), "loss is not finite"
    assert jnp.allclose(loss, ref_loss, atol=5e-3, rtol=5e-3), (loss, ref_loss)
    print("KERNEL_OK")
</pallas_src>

<mosaic_0001>
module attributes {stable_mosaic.version = 11 : i64} {
  func.func @_coarse_matching_loss_kernel(%arg0: i32, %arg1: memref<32x32xf32, #tpu.memory_space<vmem>>, %arg2: memref<32x128xf32, #tpu.memory_space<vmem>>, %arg3: memref<1x128xi32, #tpu.memory_space<vmem>>, %arg4: memref<128x1xi32, #tpu.memory_space<vmem>>, %arg5: memref<128x1xf32, #tpu.memory_space<vmem>>, %arg6: memref<1x1xf32, #tpu.memory_space<vmem>>, %arg7: memref<128x128xf32, #tpu.memory_space<vmem>>, %arg8: memref<8x128xf32, #tpu.memory_space<vmem>>, %arg9: memref<8x128xf32, #tpu.memory_space<vmem>>, %arg10: memref<8x128xf32, #tpu.memory_space<vmem>>, %arg11: memref<8x128xf32, #tpu.memory_space<vmem>>, %arg12: memref<32x1xf32, #tpu.memory_space<vmem>>, %arg13: memref<32x1xf32, #tpu.memory_space<vmem>>) attributes {dimension_semantics = [#tpu.dimension_semantics<arbitrary>], iteration_bounds = array<i64: 2>, scalar_prefetch = 0 : i64, scratch_operands = 7 : i64, tpu.core_type = #tpu.core_type<tc>, window_params = [{transform_indices = @transform_0, window_bounds = array<i64: 32, 32>}, {pipeline_mode = #tpu.pipeline_mode<synchronous>, transform_indices = @transform_1, window_bounds = array<i64: 32, 128>}, {pipeline_mode = #tpu.pipeline_mode<synchronous>, transform_indices = @transform_2, window_bounds = array<i64: 1, 128>}, {pipeline_mode = #tpu.pipeline_mode<synchronous>, transform_indices = @transform_3, window_bounds = array<i64: 128, 1>}, {pipeline_mode = #tpu.pipeline_mode<synchronous>, transform_indices = @transform_4, window_bounds = array<i64: 128, 1>}, {pipeline_mode = #tpu.pipeline_mode<synchronous>, transform_indices = @transform_5, window_bounds = array<i64: 1, 1>}]} {
    %c0_i32 = arith.constant 0 : i32
    %0 = arith.cmpi eq, %arg0, %c0_i32 : i32
    %1 = arith.extui %0 : i1 to i32
    %c0_i32_0 = arith.constant 0 : i32
    %2 = arith.cmpi ne, %1, %c0_i32_0 : i32
    scf.if %2 {
      %134 = tpu.iota {dimensions = array<i32: 1>} : vector<128x128xi32>
      %c0_70 = arith.constant 0 : index
      %c0_71 = arith.constant 0 : index
      %135 = vector.load %arg4[%c0_70, %c0_71] : memref<128x1xi32, #tpu.memory_space<vmem>>, vector<128x1xi32>
      %136 = vector.broadcast %135 : vector<128x1xi32> to vector<128x128xi32>
      %137 = arith.cmpi eq, %134, %136 : vector<128x128xi32>
      %c0_72 = arith.constant 0 : index
      %c0_73 = arith.constant 0 : index
      %138 = vector.load %arg5[%c0_72, %c0_73] : memref<128x1xf32, #tpu.memory_space<vmem>>, vector<128x1xf32>
      %cst_74 = arith.constant 0.000000e+00 : f32
      %139 = vector.shape_cast %138 : vector<128x1xf32> to vector<128x1xf32>
      %140 = vector.broadcast %139 : vector<128x1xf32> to vector<128x128xf32>
      %141 = vector.broadcast %cst_74 : f32 to vector<128x128xf32>
      %142 = arith.select %137, %140, %141 : vector<128x128xi1>, vector<128x128xf32>
      %c0_75 = arith.constant 0 : index
      %c0_76 = arith.constant 0 : index
      %143 = vector.load %arg7[%c0_75, %c0_76] : memref<128x128xf32, #tpu.memory_space<vmem>>, vector<128x128xf32>
      tpu.vector_store %arg7[%c0_75, %c0_76], %142 {strides = array<i32>} : memref<128x128xf32, #tpu.memory_space<vmem>>, vector<128x128xf32>,
      %cst_77 = arith.constant 0.000000e+00 : f32
      %144 = vector.broadcast %cst_77 : f32 to vector<8x128xf32>
      %c0_78 = arith.constant 0 : index
      %c0_79 = arith.constant 0 : index
      %145 = vector.load %arg8[%c0_78, %c0_79] : memref<8x128xf32, #tpu.memory_space<vmem>>, vector<8x128xf32>
      tpu.vector_store %arg8[%c0_78, %c0_79], %144 {strides = array<i32>} : memref<8x128xf32, #tpu.memory_space<vmem>>, vector<8x128xf32>,
      %cst_80 = arith.constant 0.000000e+00 : f32
      %146 = vector.broadcast %cst_80 : f32 to vector<8x128xf32>
      %c0_81 = arith.constant 0 : index
      %c0_82 = arith.constant 0 : index
      %147 = vector.load %arg9[%c0_81, %c0_82] : memref<8x128xf32, #tpu.memory_space<vmem>>, vector<8x128xf32>
      tpu.vector_store %arg9[%c0_81, %c0_82], %146 {strides = array<i32>} : memref<8x128xf32, #tpu.memory_space<vmem>>, vector<8x128xf32>,
      %cst_83 = arith.constant 0.000000e+00 : f32
      %148 = vector.broadcast %cst_83 : f32 to vector<8x128xf32>
      %c0_84 = arith.constant 0 : index
      %c0_85 = arith.constant 0 : index
      %149 = vector.load %arg10[%c0_84, %c0_85] : memref<8x128xf32, #tpu.memory_space<vmem>>, vector<8x128xf32>
      tpu.vector_store %arg10[%c0_84, %c0_85], %148 {strides = array<i32>} : memref<8x128xf32, #tpu.memory_space<vmem>>, vector<8x128xf32>,
      %cst_86 = arith.constant 0.000000e+00 : f32
      %150 = vector.broadcast %cst_86 : f32 to vector<8x128xf32>
      %c0_87 = arith.constant 0 : index
      %c0_88 = arith.constant 0 : index
      %151 = vector.load %arg11[%c0_87, %c0_88] : memref<8x128xf32, #tpu.memory_space<vmem>>, vector<8x128xf32>
      tpu.vector_store %arg11[%c0_87, %c0_88], %150 {strides = array<i32>} : memref<8x128xf32, #tpu.memory_space<vmem>>, vector<8x128xf32>,
      %cst_89 = arith.constant 0.000000e+00 : f32
      %152 = vector.broadcast %cst_89 : f32 to vector<32x1xf32>
      %c0_90 = arith.constant 0 : index
      %c0_91 = arith.constant 0 : index
      %153 = vector.load %arg12[%c0_90, %c0_91] : memref<32x1xf32, #tpu.memory_space<vmem>>, vector<32x1xf32>
      tpu.vector_store %arg12[%c0_90, %c0_91], %152 {strides = array<i32>} : memref<32x1xf32, #tpu.memory_space<vmem>>, vector<32x1xf32>,
      %cst_92 = arith.constant 0.000000e+00 : f32
      %154 = vector.broadcast %cst_92 : f32 to vector<32x1xf32>
      %c0_93 = arith.constant 0 : index
      %c0_94 = arith.constant 0 : index
      %155 = vector.load %arg13[%c0_93, %c0_94] : memref<32x1xf32, #tpu.memory_space<vmem>>, vector<32x1xf32>
      tpu.vector_store %arg13[%c0_93, %c0_94], %154 {strides = array<i32>} : memref<32x1xf32, #tpu.memory_space<vmem>>, vector<32x1xf32>,
    } else {
    }
    %c0 = arith.constant 0 : index
    %c0_1 = arith.constant 0 : index
    %3 = vector.load %arg1[%c0, %c0_1] : memref<32x32xf32, #tpu.memory_space<vmem>>, vector<32x32xf32>
    %c0_2 = arith.constant 0 : index
    %c0_3 = arith.constant 0 : index
    %4 = vector.load %arg2[%c0_2, %c0_3] : memref<32x128xf32, #tpu.memory_space<vmem>>, vector<32x128xf32>
    %cst = arith.constant dense<0.000000e+00> : vector<32x128xf32>
    %5 = tpu.matmul %3, %4, %cst {dimension_numbers = #tpu.dot_dimension_numbers<[1], [0], [0], [1], [0, 0, 1, 1], [], []>} : vector<32x32xf32>, vector<32x128xf32>, vector<32x128xf32> -> vector<32x128xf32>
    %cst_4 = arith.constant 2.000000e+00 : f32
    %6 = vector.broadcast %cst_4 : f32 to vector<32x128xf32>
    %7 = arith.mulf %6, %5 : vector<32x128xf32>
    %cst_5 = arith.constant 2.000000e+00 : f32
    %8 = vector.broadcast %cst_5 : f32 to vector<32x128xf32>
    %9 = arith.subf %8, %7 : vector<32x128xf32>
    %cst_6 = arith.constant 0.000000e+00 : f32
    %10 = vector.broadcast %cst_6 : f32 to vector<32x128xf32>
    %11 = arith.maximumf %9, %10 : vector<32x128xf32>
    %12 = math.sqrt %11 : vector<32x128xf32>
    %c32_i32 = arith.constant 32 : i32
    %13 = arith.muli %arg0, %c32_i32 : i32
    %14 = tpu.iota {dimensions = array<i32: 0>} : vector<32x1xi32>
    %15 = vector.broadcast %13 : i32 to vector<32x1xi32>
    %16 = arith.addi %15, %14 : vector<32x1xi32>
    %c0_7 = arith.constant 0 : index
    %c0_8 = arith.constant 0 : index
    %17 = vector.load %arg3[%c0_7, %c0_8] : memref<1x128xi32, #tpu.memory_space<vmem>>, vector<1x128xi32>
    %18 = vector.broadcast %17 : vector<1x128xi32> to vector<32x128xi32>
    %19 = vector.broadcast %16 : vector<32x1xi32> to vector<32x128xi32>
    %20 = arith.cmpi eq, %18, %19 : vector<32x128xi32>
    %21 = arith.extui %20 : vector<32x128xi1> to vector<32x128xi32>
    %22 = arith.sitofp %21 : vector<32x128xi32> to vector<32x128xf32>
    %c0_9 = arith.constant 0 : index
    %c0_10 = arith.constant 0 : index
    %23 = vector.load %arg7[%c0_9, %c0_10] : memref<128x128xf32, #tpu.memory_space<vmem>>, vector<128x128xf32>
    %cst_11 = arith.constant dense<0.000000e+00> : vector<32x128xf32>
    %24 = tpu.matmul %22, %23, %cst_11 {dimension_numbers = #tpu.dot_dimension_numbers<[1], [0], [0], [1], [0, 0, 1, 1], [], []>} : vector<32x128xf32>, vector<128x128xf32>, vector<32x128xf32> -> vector<32x128xf32>
    %cst_12 = arith.constant 0.316227764 : f32
    %25 = vector.broadcast %cst_12 : f32 to vector<32x128xf32>
    %26 = arith.cmpf ogt, %24, %25 : vector<32x128xf32>
    %27 = arith.extui %26 : vector<32x128xi1> to vector<32x128xi32>
    %28 = arith.sitofp %27 : vector<32x128xi32> to vector<32x128xf32>
    %cst_13 = arith.constant 0.000000e+00 : f32
    %29 = vector.broadcast %cst_13 : f32 to vector<32x128xf32>
    %30 = arith.cmpf oeq, %24, %29 : vector<32x128xf32>
    %31 = arith.extui %30 : vector<32x128xi1> to vector<32x128xi32>
    %32 = arith.sitofp %31 : vector<32x128xi32> to vector<32x128xf32>
    %cst_14 = arith.constant 1.000000e-01 : f32
    %33 = vector.broadcast %cst_14 : f32 to vector<32x128xf32>
    %34 = arith.subf %12, %33 : vector<32x128xf32>
    %cst_15 = arith.constant 0.000000e+00 : f32
    %35 = vector.broadcast %cst_15 : f32 to vector<32x128xf32>
    %36 = arith.maximumf %34, %35 : vector<32x128xf32>
    %37 = arith.mulf %24, %28 : vector<32x128xf32>
    %38 = arith.mulf %36, %37 : vector<32x128xf32>
    %cst_16 = arith.constant 1.400000e+00 : f32
    %39 = vector.broadcast %cst_16 : f32 to vector<32x128xf32>
    %40 = arith.subf %39, %12 : vector<32x128xf32>
    %cst_17 = arith.constant 0.000000e+00 : f32
    %41 = vector.broadcast %cst_17 : f32 to vector<32x128xf32>
    %42 = arith.maximumf %40, %41 : vector<32x128xf32>
    %43 = arith.mulf %42, %32 : vector<32x128xf32>
    %cst_18 = arith.constant 1.000000e-01 : f32
    %44 = vector.broadcast %cst_18 : f32 to vector<32x128xf32>
    %45 = arith.subf %12, %44 : vector<32x128xf32>
    %cst_19 = arith.constant 2.400000e+01 : f32
    %46 = vector.broadcast %cst_19 : f32 to vector<32x128xf32>
    %47 = arith.mulf %46, %45 : vector<32x128xf32>
    %48 = arith.mulf %47, %38 : vector<32x128xf32>
    %cst_20 = arith.constant 1.400000e+00 : f32
    %49 = vector.broadcast %cst_20 : f32 to vector<32x128xf32>
    %50 = arith.subf %49, %12 : vector<32x128xf32>
    %cst_21 = arith.constant 2.400000e+01 : f32
    %51 = vector.broadcast %cst_21 : f32 to vector<32x128xf32>
    %52 = arith.mulf %51, %50 : vector<32x128xf32>
    %53 = arith.mulf %52, %43 : vector<32x128xf32>
    %cst_22 = arith.constant 4.000000e+01 : f32
    %54 = vector.broadcast %cst_22 : f32 to vector<32x128xf32>
    %55 = arith.subf %48, %54 : vector<32x128xf32>
    %56 = math.exp %55 : vector<32x128xf32>
    %cst_23 = arith.constant 2.400000e+01 : f32
    %57 = vector.broadcast %cst_23 : f32 to vector<32x128xf32>
    %58 = arith.subf %53, %57 : vector<32x128xf32>
    %59 = math.exp %58 : vector<32x128xf32>
    %cst_24 = arith.constant dense<0.000000e+00> : vector<32xf32>
    %60 = vector.multi_reduction <add>, %56, %cst_24 [1] : vector<32x128xf32> to vector<32xf32>
    %61 = vector.shape_cast %60 : vector<32xf32> to vector<32x1xf32>
    %cst_25 = arith.constant dense<0.000000e+00> : vector<32xf32>
    %62 = vector.multi_reduction <add>, %59, %cst_25 [1] : vector<32x128xf32> to vector<32xf32>
    %63 = vector.shape_cast %62 : vector<32xf32> to vector<32x1xf32>
    %cst_26 = arith.constant dense<0.000000e+00> : vector<32xf32>
    %64 = vector.multi_reduction <add>, %28, %cst_26 [1] : vector<32x128xf32> to vector<32xf32>
    %65 = vector.shape_cast %64 : vector<32xf32> to vector<32x1xf32>
    %cst_27 = arith.constant dense<0.000000e+00> : vector<32xf32>
    %66 = vector.multi_reduction <add>, %32, %cst_27 [1] : vector<32x128xf32> to vector<32xf32>
    %67 = vector.shape_cast %66 : vector<32xf32> to vector<32x1xf32>
    %cst_28 = arith.constant 3.356200e-16 : f32
    %68 = vector.broadcast %cst_28 : f32 to vector<32x1xf32>
    %69 = arith.subf %61, %68 : vector<32x1xf32>
    %cst_29 = arith.constant 1.000000e-30 : f32
    %70 = vector.broadcast %cst_29 : f32 to vector<32x1xf32>
    %71 = arith.maximumf %69, %70 : vector<32x1xf32>
    %cst_30 = arith.constant 2.98235636E-9 : f32
    %72 = vector.broadcast %cst_30 : f32 to vector<32x1xf32>
    %73 = arith.subf %63, %72 : vector<32x1xf32>
    %cst_31 = arith.constant 1.000000e-30 : f32
    %74 = vector.broadcast %cst_31 : f32 to vector<32x1xf32>
    %75 = arith.maximumf %73, %74 : vector<32x1xf32>
    %cst_32 = arith.constant 7.900000e+01 : f32
    %76 = vector.broadcast %cst_32 : f32 to vector<32x1xf32>
    %77 = arith.subf %67, %76 : vector<32x1xf32>
    %78 = math.log %71 : vector<32x1xf32>
    %cst_33 = arith.constant 4.000000e+01 : f32
    %79 = vector.broadcast %cst_33 : f32 to vector<32x1xf32>
    %80 = arith.addf %79, %78 : vector<32x1xf32>
    %81 = math.log %75 : vector<32x1xf32>
    %cst_34 = arith.constant 2.400000e+01 : f32
    %82 = vector.broadcast %cst_34 : f32 to vector<32x1xf32>
    %83 = arith.addf %82, %81 : vector<32x1xf32>
    %84 = arith.addf %80, %83 : vector<32x1xf32>
    %cst_35 = arith.constant 0.000000e+00 : f32
    %85 = vector.broadcast %cst_35 : f32 to vector<32x1xf32>
    %86 = arith.maximumf %84, %85 : vector<32x1xf32>
    %87 = math.absf %84 : vector<32x1xf32>
    %cst_36 = arith.constant 0.000000e+00 : f32
    %88 = vector.broadcast %cst_36 : f32 to vector<32x1xf32>
    %89 = arith.subf %88, %87 : vector<32x1xf32>
    %90 = math.exp %89 : vector<32x1xf32>
    %cst_37 = arith.constant 1.000000e+00 : f32
    %91 = vector.broadcast %cst_37 : f32 to vector<32x1xf32>
    %92 = arith.addf %91, %90 : vector<32x1xf32>
    %93 = math.log %92 : vector<32x1xf32>
    %94 = arith.addf %86, %93 : vector<32x1xf32>
    %cst_38 = arith.constant 0.0416666679 : f32
    %95 = vector.broadcast %cst_38 : f32 to vector<32x1xf32>
    %96 = arith.mulf %94, %95 : vector<32x1xf32>
    %cst_39 = arith.constant 0.000000e+00 : f32
    %97 = vector.broadcast %cst_39 : f32 to vector<32x1xf32>
    %98 = arith.cmpf ogt, %65, %97 : vector<32x1xf32>
    %cst_40 = arith.constant 0.000000e+00 : f32
    %99 = vector.broadcast %cst_40 : f32 to vector<32x1xf32>
    %100 = arith.cmpf ogt, %77, %99 : vector<32x1xf32>
    %101 = arith.andi %98, %100 : vector<32x1xi1>
    %102 = arith.extui %101 : vector<32x1xi1> to vector<32x1xi32>
    %103 = arith.sitofp %102 : vector<32x1xi32> to vector<32x1xf32>
    %c0_41 = arith.constant 0 : index
    %c0_42 = arith.constant 0 : index
    %104 = vector.load %arg12[%c0_41, %c0_42] : memref<32x1xf32, #tpu.memory_space<vmem>>, vector<32x1xf32>
    %105 = arith.mulf %96, %103 : vector<32x1xf32>
    %106 = arith.addf %104, %105 : vector<32x1xf32>
    %c0_43 = arith.constant 0 : index
    %c0_44 = arith.constant 0 : index
    %107 = vector.load %arg12[%c0_43, %c0_44] : memref<32x1xf32, #tpu.memory_space<vmem>>, vector<32x1xf32>
    tpu.vector_store %arg12[%c0_43, %c0_44], %106 {strides = array<i32>} : memref<32x1xf32, #tpu.memory_space<vmem>>, vector<32x1xf32>,
    %c0_45 = arith.constant 0 : index
    %c0_46 = arith.constant 0 : index
    %108 = vector.load %arg13[%c0_45, %c0_46] : memref<32x1xf32, #tpu.memory_space<vmem>>, vector<32x1xf32>
    %109 = arith.addf %108, %103 : vector<32x1xf32>
    %c0_47 = arith.constant 0 : index
    %c0_48 = arith.constant 0 : index
    %110 = vector.load %arg13[%c0_47, %c0_48] : memref<32x1xf32, #tpu.memory_space<vmem>>, vector<32x1xf32>
    tpu.vector_store %arg13[%c0_47, %c0_48], %109 {strides = array<i32>} : memref<32x1xf32, #tpu.memory_space<vmem>>, vector<32x1xf32>,
    %c0_49 = arith.constant 0 : index
    %c0_50 = arith.constant 0 : index
    %111 = vector.load %arg8[%c0_49, %c0_50] : memref<8x128xf32, #tpu.memory_space<vmem>>, vector<8x128xf32>
    %112 = vector.shape_cast %56 : vector<32x128xf32> to vector<4x8x128xf32>
    %cst_51 = arith.constant dense<0.000000e+00> : vector<8x128xf32>
    %113 = vector.multi_reduction <add>, %112, %cst_51 [0] : vector<4x8x128xf32> to vector<8x128xf32>
    %114 = arith.addf %111, %113 : vector<8x128xf32>
    %c0_52 = arith.constant 0 : index
    %c0_53 = arith.constant 0 : index
    %115 = vector.load %arg8[%c0_52, %c0_53] : memref<8x128xf32, #tpu.memory_space<vmem>>, vector<8x128xf32>
    tpu.vector_store %arg8[%c0_52, %c0_53], %114 {strides = array<i32>} : memref<8x128xf32, #tpu.memory_space<vmem>>, vector<8x128xf32>,
    %c0_54 = arith.constant 0 : index
    %c0_55 = arith.constant 0 : index
    %116 = vector.load %arg9[%c0_54, %c0_55] : memref<8x128xf32, #tpu.memory_space<vmem>>, vector<8x128xf32>
    %117 = vector.shape_cast %59 : vector<32x128xf32> to vector<4x8x128xf32>
    %cst_56 = arith.constant dense<0.000000e+00> : vector<8x128xf32>
    %118 = vector.multi_reduction <add>, %117, %cst_56 [0] : vector<4x8x128xf32> to vector<8x128xf32>
    %119 = arith.addf %116, %118 : vector<8x128xf32>
    %c0_57 = arith.constant 0 : index
    %c0_58 = arith.constant 0 : index
    %120 = vector.load %arg9[%c0_57, %c0_58] : memref<8x128xf32, #tpu.memory_space<vmem>>, vector<8x128xf32>
    tpu.vector_store %arg9[%c0_57, %c0_58], %119 {strides = array<i32>} : memref<8x128xf32, #tpu.memory_space<vmem>>, vector<8x128xf32>,
    %c0_59 = arith.constant 0 : index
    %c0_60 = arith.constant 0 : index
    %121 = vector.load %arg10[%c0_59, %c0_60] : memref<8x128xf32, #tpu.memory_space<vmem>>, vector<8x128xf32>
    %122 = vector.shape_cast %28 : vector<32x128xf32> to vector<4x8x128xf32>
    %cst_61 = arith.constant dense<0.000000e+00> : vector<8x128xf32>
    %123 = vector.multi_reduction <add>, %122, %cst_61 [0] : vector<4x8x128xf32> to vector<8x128xf32>
    %124 = arith.addf %121, %123 : vector<8x128xf32>
    %c0_62 = arith.constant 0 : index
    %c0_63 = arith.constant 0 : index
    %125 = vector.load %arg10[%c0_62, %c0_63] : memref<8x128xf32, #tpu.memory_space<vmem>>, vector<8x128xf32>
    tpu.vector_store %arg10[%c0_62, %c0_63], %124 {strides = array<i32>} : memref<8x128xf32, #tpu.memory_space<vmem>>, vector<8x128xf32>,
    %c0_64 = arith.constant 0 : index
    %c0_65 = arith.constant 0 : index
    %126 = vector.load %arg11[%c0_64, %c0_65] : memref<8x128xf32, #tpu.memory_space<vmem>>, vector<8x128xf32>
    %127 = vector.shape_cast %32 : vector<32x128xf32> to vector<4x8x128xf32>
    %cst_66 = arith.constant dense<0.000000e+00> : vector<8x128xf32>
    %128 = vector.multi_reduction <add>, %127, %cst_66 [0] : vector<4x8x128xf32> to vector<8x128xf32>
    %129 = arith.addf %126, %128 : vector<8x128xf32>
    %c0_67 = arith.constant 0 : index
    %c0_68 = arith.constant 0 : index
    %130 = vector.load %arg11[%c0_67, %c0_68] : memref<8x128xf32, #tpu.memory_space<vmem>>, vector<8x128xf32>
    tpu.vector_store %arg11[%c0_67, %c0_68], %129 {strides = array<i32>} : memref<8x128xf32, #tpu.memory_space<vmem>>, vector<8x128xf32>,
    %c1_i32 = arith.constant 1 : i32
    %131 = arith.cmpi eq, %arg0, %c1_i32 : i32
    %132 = arith.extui %131 : i1 to i32
    %c0_i32_69 = arith.constant 0 : i32
    %133 = arith.cmpi ne, %132, %c0_i32_69 : i32
    scf.if %133 {
      %c0_70 = arith.constant 0 : index
      %c0_71 = arith.constant 0 : index
      %134 = vector.load %arg8[%c0_70, %c0_71] : memref<8x128xf32, #tpu.memory_space<vmem>>, vector<8x128xf32>
      %cst_72 = arith.constant dense<0.000000e+00> : vector<128xf32>
      %135 = vector.multi_reduction <add>, %134, %cst_72 [0] : vector<8x128xf32> to vector<128xf32>
      %136 = vector.shape_cast %135 : vector<128xf32> to vector<1x128xf32>
      %c0_73 = arith.constant 0 : index
      %c0_74 = arith.constant 0 : index
      %137 = vector.load %arg9[%c0_73, %c0_74] : memref<8x128xf32, #tpu.memory_space<vmem>>, vector<8x128xf32>
      %cst_75 = arith.constant dense<0.000000e+00> : vector<128xf32>
      %138 = vector.multi_reduction <add>, %137, %cst_75 [0] : vector<8x128xf32> to vector<128xf32>
      %139 = vector.shape_cast %138 : vector<128xf32> to vector<1x128xf32>
      %c0_76 = arith.constant 0 : index
      %c0_77 = arith.constant 0 : index
      %140 = vector.load %arg10[%c0_76, %c0_77] : memref<8x128xf32, #tpu.memory_space<vmem>>, vector<8x128xf32>
      %cst_78 = arith.constant dense<0.000000e+00> : vector<128xf32>
      %141 = vector.multi_reduction <add>, %140, %cst_78 [0] : vector<8x128xf32> to vector<128xf32>
      %142 = vector.shape_cast %141 : vector<128xf32> to vector<1x128xf32>
      %c0_79 = arith.constant 0 : index
      %c0_80 = arith.constant 0 : index
      %143 = vector.load %arg11[%c0_79, %c0_80] : memref<8x128xf32, #tpu.memory_space<vmem>>, vector<8x128xf32>
      %cst_81 = arith.constant dense<0.000000e+00> : vector<128xf32>
      %144 = vector.multi_reduction <add>, %143, %cst_81 [0] : vector<8x128xf32> to vector<128xf32>
      %145 = vector.shape_cast %144 : vector<128xf32> to vector<1x128xf32>
      %cst_82 = arith.constant 1.69934165E-17 : f32
      %146 = vector.broadcast %cst_82 : f32 to vector<1x128xf32>
      %147 = arith.subf %136, %146 : vector<1x128xf32>
      %cst_83 = arith.constant 1.000000e-30 : f32
      %148 = vector.broadcast %cst_83 : f32 to vector<1x128xf32>
      %149 = arith.maximumf %147, %148 : vector<1x128xf32>
      %cst_84 = arith.constant 1.51005375E-10 : f32
      %150 = vector.broadcast %cst_84 : f32 to vector<1x128xf32>
      %151 = arith.subf %139, %150 : vector<1x128xf32>
      %cst_85 = arith.constant 1.000000e-30 : f32
      %152 = vector.broadcast %cst_85 : f32 to vector<1x128xf32>
      %153 = arith.maximumf %151, %152 : vector<1x128xf32>
      %cst_86 = arith.constant 4.000000e+00 : f32
      %154 = vector.broadcast %cst_86 : f32 to vector<1x128xf32>
      %155 = arith.subf %145, %154 : vector<1x128xf32>
      %156 = math.log %149 : vector<1x128xf32>
      %cst_87 = arith.constant 4.000000e+01 : f32
      %157 = vector.broadcast %cst_87 : f32 to vector<1x128xf32>
      %158 = arith.addf %157, %156 : vector<1x128xf32>
      %159 = math.log %153 : vector<1x128xf32>
      %cst_88 = arith.constant 2.400000e+01 : f32
      %160 = vector.broadcast %cst_88 : f32 to vector<1x128xf32>
      %161 = arith.addf %160, %159 : vector<1x128xf32>
      %162 = arith.addf %158, %161 : vector<1x128xf32>
      %cst_89 = arith.constant 0.000000e+00 : f32
      %163 = vector.broadcast %cst_89 : f32 to vector<1x128xf32>
      %164 = arith.maximumf %162, %163 : vector<1x128xf32>
      %165 = math.absf %162 : vector<1x128xf32>
      %cst_90 = arith.constant 0.000000e+00 : f32
      %166 = vector.broadcast %cst_90 : f32 to vector<1x128xf32>
      %167 = arith.subf %166, %165 : vector<1x128xf32>
      %168 = math.exp %167 : vector<1x128xf32>
      %cst_91 = arith.constant 1.000000e+00 : f32
      %169 = vector.broadcast %cst_91 : f32 to vector<1x128xf32>
      %170 = arith.addf %169, %168 : vector<1x128xf32>
      %171 = math.log %170 : vector<1x128xf32>
      %172 = arith.addf %164, %171 : vector<1x128xf32>
      %cst_92 = arith.constant 0.0416666679 : f32
      %173 = vector.broadcast %cst_92 : f32 to vector<1x128xf32>
      %174 = arith.mulf %172, %173 : vector<1x128xf32>
      %cst_93 = arith.constant 0.000000e+00 : f32
      %175 = vector.broadcast %cst_93 : f32 to vector<1x128xf32>
      %176 = arith.cmpf ogt, %142, %175 : vector<1x128xf32>
      %cst_94 = arith.constant 0.000000e+00 : f32
      %177 = vector.broadcast %cst_94 : f32 to vector<1x128xf32>
      %178 = arith.cmpf ogt, %155, %177 : vector<1x128xf32>
      %179 = arith.andi %176, %178 : vector<1x128xi1>
      %180 = arith.extui %179 : vector<1x128xi1> to vector<1x128xi32>
      %181 = arith.sitofp %180 : vector<1x128xi32> to vector<1x128xf32>
      %182 = arith.mulf %174, %181 : vector<1x128xf32>
      %cst_95 = arith.constant dense<0.000000e+00> : vector<1xf32>
      %183 = vector.multi_reduction <add>, %182, %cst_95 [1] : vector<1x128xf32> to vector<1xf32>
      %184 = vector.shape_cast %183 : vector<1xf32> to vector<1x1xf32>
      %cst_96 = arith.constant dense<0.000000e+00> : vector<1xf32>
      %185 = vector.multi_reduction <add>, %181, %cst_96 [1] : vector<1x128xf32> to vector<1xf32>
      %186 = vector.shape_cast %185 : vector<1xf32> to vector<1x1xf32>
      %c0_97 = arith.constant 0 : index
      %c0_98 = arith.constant 0 : index
      %187 = vector.load %arg12[%c0_97, %c0_98] : memref<32x1xf32, #tpu.memory_space<vmem>>, vector<32x1xf32>
      %cst_99 = arith.constant dense<0.000000e+00> : vector<1xf32>
      %188 = vector.multi_reduction <add>, %187, %cst_99 [0] : vector<32x1xf32> to vector<1xf32>
      %189 = vector.shape_cast %188 : vector<1xf32> to vector<1x1xf32>
      %c0_100 = arith.constant 0 : index
      %c0_101 = arith.constant 0 : index
      %190 = vector.load %arg13[%c0_100, %c0_101] : memref<32x1xf32, #tpu.memory_space<vmem>>, vector<32x1xf32>
      %cst_102 = arith.constant dense<0.000000e+00> : vector<1xf32>
      %191 = vector.multi_reduction <add>, %190, %cst_102 [0] : vector<32x1xf32> to vector<1xf32>
      %192 = vector.shape_cast %191 : vector<1xf32> to vector<1x1xf32>
      %193 = arith.divf %189, %192 : vector<1x1xf32>
      %194 = arith.divf %184, %186 : vector<1x1xf32>
      %195 = arith.addf %193, %194 : vector<1x1xf32>
      %cst_103 = arith.constant 5.000000e-01 : f32
      %196 = vector.broadcast %cst_103 : f32 to vector<1x1xf32>
      %197 = arith.mulf %196, %195 : vector<1x1xf32>
      %c0_104 = arith.constant 0 : index
      %c0_105 = arith.constant 0 : index
      %198 = vector.load %arg6[%c0_104, %c0_105] : memref<1x1xf32, #tpu.memory_space<vmem>>, vector<1x1xf32>
      tpu.vector_store %arg6[%c0_104, %c0_105], %197 {strides = array<i32>} : memref<1x1xf32, #tpu.memory_space<vmem>>, vector<1x1xf32>,
    } else {
    }
    return
  }
  func.func @transform_0(%arg0: i32) -> (i32, i32) {
    %c0_i32 = arith.constant 0 : i32
    %c0_i32_0 = arith.constant 0 : i32
    return %arg0, %c0_i32 : i32, i32
  }
  func.func @transform_1(%arg0: i32) -> (i32, i32) {
    %c0_i32 = arith.constant 0 : i32
    %c0_i32_0 = arith.constant 0 : i32
    %c0_i32_1 = arith.constant 0 : i32
    return %c0_i32, %c0_i32_0 : i32, i32
  }
  func.func @transform_2(%arg0: i32) -> (i32, i32) {
    %c0_i32 = arith.constant 0 : i32
    %c0_i32_0 = arith.constant 0 : i32
    %c0_i32_1 = arith.constant 0 : i32
    return %c0_i32, %c0_i32_0 : i32, i32
  }
  func.func @transform_3(%arg0: i32) -> (i32, i32) {
    %c0_i32 = arith.constant 0 : i32
    %c0_i32_0 = arith.constant 0 : i32
    %c0_i32_1 = arith.constant 0 : i32
    return %c0_i32, %c0_i32_0 : i32, i32
  }
  func.func @transform_4(%arg0: i32) -> (i32, i32) {
    %c0_i32 = arith.constant 0 : i32
    %c0_i32_0 = arith.constant 0 : i32
    %c0_i32_1 = arith.constant 0 : i32
    return %c0_i32, %c0_i32_0 : i32, i32
  }
  func.func @transform_5(%arg0: i32) -> (i32, i32) {
    %c0_i32 = arith.constant 0 : i32
    %c0_i32_0 = arith.constant 0 : i32
    %c0_i32_1 = arith.constant 0 : i32
    return %c0_i32, %c0_i32_0 : i32, i32
  }
}

</mosaic_0001>

<llo_original>
// kernel: coarse_matching_loss.1
$region0: #{coarse_matching_loss.1}
  #allocation0 [shape = 'u32[]', space=smem, size = 0x4, offset = 0x4, fixed_abs, tag = 'smem constant byte address 0x4 - core index']
  #allocation1 [shape = 'u32[144,128]{1,0:T(1,128)}', space=vmem, size = 0x12000, scoped, tag = 'internal scratch']
  #allocation2 [shape = 'f32[128,128]{1,0:T(8,128)}', space=vmem, size = 0x10000, scoped, tag = 'scratch operand']
  #allocation3 [shape = 'f32[8,128]{1,0:T(8,128)}', space=vmem, size = 0x1000, scoped, tag = 'scratch operand']
  #allocation4 [shape = 'f32[8,128]{1,0:T(8,128)}', space=vmem, size = 0x1000, scoped, tag = 'scratch operand']
  #allocation5 [shape = 'f32[8,128]{1,0:T(8,128)}', space=vmem, size = 0x1000, scoped, tag = 'scratch operand']
  #allocation6 [shape = 'f32[8,128]{1,0:T(8,128)}', space=vmem, size = 0x1000, scoped, tag = 'scratch operand']
  #allocation7 [shape = 'f32[32,1]{1,0:T(8,128)}', space=vmem, size = 0x4000, scoped, tag = 'scratch operand']
  #allocation8 [shape = 'f32[32,1]{1,0:T(8,128)}', space=vmem, size = 0x4000, scoped, tag = 'scratch operand']
  %s0 = inlined_call_operand.vmem [shape: f32[64,32], index: 0, kind: input, shape index: {}]
  %s1 = inlined_call_operand.vmem [shape: f32[32,128], index: 1, kind: input, shape index: {}]
  %s2 = inlined_call_operand.vmem [shape: s32[1,128], index: 2, kind: input, shape index: {}]
  %s3 = inlined_call_operand.vmem [shape: s32[128,1], index: 3, kind: input, shape index: {}]
  %s4 = inlined_call_operand.vmem [shape: f32[128,1], index: 4, kind: input, shape index: {}]
  %s5 = inlined_call_operand.hbm [shape: f32[1,1], index: 5, kind: output, shape index: {}]
  %s6 = sld [smem:[#allocation0]]
  $region61: #{coarse_matching_loss.1} parent=0
    _
  %s8 = ssub.s32 1, %s6
  %s9 = scalar_select 0, %s8, %s6
  $region1: #{coarse_matching_loss.1} parent=0
    #allocation9 [shape = 'u8[512]{0}', space=vmem, size = 0x400, scoped, tag = 'output window, operand 0, single buffered']
    #allocation10 [shape = 's32[2]{0}', space=sflag, size = 0x8, scoped, tag = 'scoped memory for coarse_matching_loss.1']
    %10 = vsyncpa [#allocation10], 0
    loop: start=0, step=1, limit=4
    $region2: #{coarse_matching_loss.1} parent=1 // loop_pre_header
      _
    $region3: #{coarse_matching_loss.1} parent=1 // loop_header
      %s12 = sphi 0, %s16
      %p13 = scmp.ge.s32.totalorder %s12, 4
      %s22 = sphi 0, %s24
      %s25 = sphi 0, %s22
      %s26 = sphi 0, %s25
      %s42 = sphi 0, %s26
      %s46 = sphi 0, %s46
      %s48 = sphi 0, %s46
      %s49 = sphi 0, %s48
      %s63 = sphi 0, %s49
      %s67 = sphi 0, %s67
      %s69 = sphi 0, %s67
      %s70 = sphi 0, %s69
      %s84 = sphi 0, %s70
      %s88 = sphi 0, %s88
      %s90 = sphi 0, %s88
      %s91 = sphi 0, %s90
      %s105 = sphi 0, %s91
      %s109 = sphi 0, %s109
      %s111 = sphi 0, %s109
      %s112 = sphi 0, %s111
      %s126 = sphi 0, %s112
      %s130 = sphi 0, %s130
      %s132 = sphi 0, %s130
      %s133 = sphi 0, %s132
      %s147 = sphi 0, %s133
    $region4: #{coarse_matching_loss.1} parent=1 // loop_header_branch
      %15 = sbr.rel (%p13) target = $region8
    $region5: #{coarse_matching_loss.1} parent=1 // loop_body
      %s17 = ssub.s32 %s12, 1
      %s18 = ssub.s32 %s12, 2
      %s19 = sadd.s32 %s12, 1
      %s20 = ssub.s32 %s12, %s19
      %p21 = scmp.eq.s32.totalorder %s20, 0
      %s23 = sadd.s32 %s22, 1
      %s24 = scalar_select %p21, %s22, %s23
      %p27 = pneg %p21
      %p28 = scmp.eq.s32.totalorder %s12, 1
      %p29 = por %p27, %p28
      %p30 = scmp.ne.s32.totalorder %s22, %s25
      %p31 = scmp.eq.s32.totalorder %s12, 0
      %p32 = por %p30, %p31
      %p33 = scmp.ne.s32.totalorder %s22, %s25
      %p34 = scmp.eq.s32.totalorder %s17, 1
      %p35 = por %p33, %p34
      %p36 = scmp.ne.s32.totalorder %s25, %s26
      %p37 = scmp.eq.s32.totalorder %s17, 0
      %p38 = por %p36, %p37
      %p39 = scmp.ne.s32.totalorder %s25, %s26
      %p40 = scmp.eq.s32.totalorder %s18, 1
      %p41 = por %p39, %p40
      %p43 = scmp.ne.s32.totalorder %s26, %s42
      %p44 = scmp.eq.s32.totalorder %s18, 0
      %p45 = por %p43, %p44
      %s47 = sadd.s32 %s46, 1
      %p50 = scmp.eq.s32.totalorder %s12, 1
      %p51 = scmp.ne.s32.totalorder %s46, %s48
      %p52 = scmp.eq.s32.totalorder %s12, 0
      %p53 = por %p51, %p52
      %p54 = scmp.ne.s32.totalorder %s46, %s48
      %p55 = scmp.eq.s32.totalorder %s17, 1
      %p56 = por %p54, %p55
      %p57 = scmp.ne.s32.totalorder %s48, %s49
      %p58 = scmp.eq.s32.totalorder %s17, 0
      %p59 = por %p57, %p58
      %p60 = scmp.ne.s32.totalorder %s48, %s49
      %p61 = scmp.eq.s32.totalorder %s18, 1
      %p62 = por %p60, %p61
      %p64 = scmp.ne.s32.totalorder %s49, %s63
      %p65 = scmp.eq.s32.totalorder %s18, 0
      %p66 = por %p64, %p65
      %s68 = sadd.s32 %s67, 1
      %p71 = scmp.eq.s32.totalorder %s12, 1
      %p72 = scmp.ne.s32.totalorder %s67, %s69
      %p73 = scmp.eq.s32.totalorder %s12, 0
      %p74 = por %p72, %p73
      %p75 = scmp.ne.s32.totalorder %s67, %s69
      %p76 = scmp.eq.s32.totalorder %s17, 1
      %p77 = por %p75, %p76
      %p78 = scmp.ne.s32.totalorder %s69, %s70
      %p79 = scmp.eq.s32.totalorder %s17, 0
      %p80 = por %p78, %p79
      %p81 = scmp.ne.s32.totalorder %s69, %s70
      %p82 = scmp.eq.s32.totalorder %s18, 1
      %p83 = por %p81, %p82
      %p85 = scmp.ne.s32.totalorder %s70, %s84
      %p86 = scmp.eq.s32.totalorder %s18, 0
      %p87 = por %p85, %p86
      %s89 = sadd.s32 %s88, 1
      %p92 = scmp.eq.s32.totalorder %s12, 1
      %p93 = scmp.ne.s32.totalorder %s88, %s90
      %p94 = scmp.eq.s32.totalorder %s12, 0
      %p95 = por %p93, %p94
      %p96 = scmp.ne.s32.totalorder %s88, %s90
      %p97 = scmp.eq.s32.totalorder %s17, 1
      %p98 = por %p96, %p97
      %p99 = scmp.ne.s32.totalorder %s90, %s91
      %p100 = scmp.eq.s32.totalorder %s17, 0
      %p101 = por %p99, %p100
      %p102 = scmp.ne.s32.totalorder %s90, %s91
      %p103 = scmp.eq.s32.totalorder %s18, 1
      %p104 = por %p102, %p103
      %p106 = scmp.ne.s32.totalorder %s91, %s105
      %p107 = scmp.eq.s32.totalorder %s18, 0
      %p108 = por %p106, %p107
      %s110 = sadd.s32 %s109, 1
      %p113 = scmp.eq.s32.totalorder %s12, 1
      %p114 = scmp.ne.s32.totalorder %s109, %s111
      %p115 = scmp.eq.s32.totalorder %s12, 0
      %p116 = por %p114, %p115
      %p117 = scmp.ne.s32.totalorder %s109, %s111
      %p118 = scmp.eq.s32.totalorder %s17, 1
      %p119 = por %p117, %p118
      %p120 = scmp.ne.s32.totalorder %s111, %s112
      %p121 = scmp.eq.s32.totalorder %s17, 0
      %p122 = por %p120, %p121
      %p123 = scmp.ne.s32.totalorder %s111, %s112
      %p124 = scmp.eq.s32.totalorder %s18, 1
      %p125 = por %p123, %p124
      %p127 = scmp.ne.s32.totalorder %s112, %s126
      %p128 = scmp.eq.s32.totalorder %s18, 0
      %p129 = por %p127, %p128
      %s131 = sadd.s32 %s130, 1
      %p134 = scmp.eq.s32.totalorder %s12, 1
      %p135 = scmp.ne.s32.totalorder %s130, %s132
      %p136 = scmp.eq.s32.totalorder %s12, 0
      %p137 = por %p135, %p136
      %p138 = scmp.ne.s32.totalorder %s130, %s132
      %p139 = scmp.eq.s32.totalorder %s17, 1
      %p140 = por %p138, %p139
      %p141 = scmp.ne.s32.totalorder %s132, %s133
      %p142 = scmp.eq.s32.totalorder %s17, 0
      %p143 = por %p141, %p142
      %p144 = scmp.ne.s32.totalorder %s132, %s133
      %p145 = scmp.eq.s32.totalorder %s18, 1
      %p146 = por %p144, %p145
      %p148 = scmp.ne.s32.totalorder %s133, %s147
      %p149 = scmp.eq.s32.totalorder %s18, 0
      %p150 = por %p148, %p149
      %p151 = scmp.le.s32.totalorder 1, %s12
      %p152 = scmp.lt.s32.totalorder %s12, 3
      %p153 = pnand %p151, %p152
      %p154 = pneg %p153
      // Predicated region
      $region9: #{coarse_matching_loss.1} parent=5 // pred_check
        _
      $region10: #{coarse_matching_loss.1} parent=5 // pred_check_branch
        %156 = sbr.rel (%p153) target = $region12
      $region11: #{coarse_matching_loss.1} parent=5 // pred_region
        %s157 = ssub.s32 %s12, 1
        // Predicated region
        $region13: #{coarse_matching_loss.1} parent=11 // pred_check
          %p158 = pneg %p59
        $region14: #{coarse_matching_loss.1} parent=11 // pred_check_branch
          %160 = sbr.rel (%p158) target = $region16
        $region15: #{coarse_matching_loss.1} parent=11 // pred_region
          _
        $region16: #{coarse_matching_loss.1} parent=11 // pred_fallthru
          _
        // Predicated region
        $region17: #{coarse_matching_loss.1} parent=11 // pred_check
          %p161 = pneg %p80
        $region18: #{coarse_matching_loss.1} parent=11 // pred_check_branch
          %163 = sbr.rel (%p161) target = $region20
        $region19: #{coarse_matching_loss.1} parent=11 // pred_region
          _
        $region20: #{coarse_matching_loss.1} parent=11 // pred_fallthru
          _
        // Predicated region
        $region21: #{coarse_matching_loss.1} parent=11 // pred_check
          %p164 = pneg %p101
        $region22: #{coarse_matching_loss.1} parent=11 // pred_check_branch
          %166 = sbr.rel (%p164) target = $region24
        $region23: #{coarse_matching_loss.1} parent=11 // pred_region
          _
        $region24: #{coarse_matching_loss.1} parent=11 // pred_fallthru
          _
        // Predicated region
        $region25: #{coarse_matching_loss.1} parent=11 // pred_check
          %p167 = pneg %p122
        $region26: #{coarse_matching_loss.1} parent=11 // pred_check_branch
          %169 = sbr.rel (%p167) target = $region28
        $region27: #{coarse_matching_loss.1} parent=11 // pred_region
          _
        $region28: #{coarse_matching_loss.1} parent=11 // pred_fallthru
          _
      $region12: #{coarse_matching_loss.1} parent=5 // pred_fallthru
        _
      %p170 = scmp.lt.s32.totalorder %s12, 2
      // Predicated region
      $region29: #{coarse_matching_loss.1} parent=5 // pred_check
        %p171 = pneg %p170
      $region30: #{coarse_matching_loss.1} parent=5 // pred_check_branch
        %173 = sbr.rel (%p171) target = $region32
      $region31: #{coarse_matching_loss.1} parent=5 // pred_region
        // Predicated region
        $region33: #{coarse_matching_loss.1} parent=31 // pred_check
          %p174 = pneg %p32
        $region34: #{coarse_matching_loss.1} parent=31 // pred_check_branch
          %176 = sbr.rel (%p174) target = $region36
        $region35: #{coarse_matching_loss.1} parent=31 // pred_region
          %s177 = smul.u32 4, %s12
          %p178 = scmp.lt.s32.totalorder %s177, 7
          %s179 = scalar_select %p178, %s177, 7
          %s180 = smul.addr %s179, 8
          %s181 = scalar_lea.vmem %s0, %s180
          %s182 = smul.u32 4, %s12
        $region36: #{coarse_matching_loss.1} parent=31 // pred_fallthru
          _
      $region32: #{coarse_matching_loss.1} parent=5 // pred_fallthru
        _
      %p183 = scmp.le.s32.totalorder 1, %s12
      %p184 = scmp.lt.s32.totalorder %s12, 3
      %p185 = pnand %p183, %p184
      %p186 = pneg %p185
      // Predicated region
      $region37: #{coarse_matching_loss.1} parent=5 // pred_check
        _
      $region38: #{coarse_matching_loss.1} parent=5 // pred_check_branch
        %188 = sbr.rel (%p185) target = $region40
      $region39: #{coarse_matching_loss.1} parent=5 // pred_region
        %s189 = ssub.s32 %s12, 1
        %s190 = smul.u32 4, %s17
        %p191 = scmp.lt.s32.totalorder %s190, 7
        %s192 = scalar_select %p191, %s190, 7
        %s193 = smul.addr %s192, 8
        %s194 = scalar_lea.vmem %s0, %s193
        %p195 = pneg %p38
        %p196 = pneg %p35
        %p197 = pneg %p59
        %p198 = pneg %p56
        %p199 = pneg %p80
        %p200 = pneg %p77
        %p201 = pneg %p101
        %p202 = pneg %p98
        %p203 = pneg %p122
        %p204 = pneg %p119
        %p205 = pneg %p143
        %p206 = pneg %p140
        %s207 = smul.u32 4, %s17
        %p208 = scmp.lt.s32.totalorder %s207, 7
        %s209 = scalar_select %p208, %s207, 7
        %s210 = smul.addr %s209, 8
        %s211 = scalar_lea.vmem %s0, %s210
        %s212 = smul.u32 4, %s17
        %p213 = scmp.eq.s32.totalorder %s17, 0
        // Predicated region
        $region41: #{coarse_matching_loss.1} parent=39 // pred_check
          %p214 = pneg %p213
        $region42: #{coarse_matching_loss.1} parent=39 // pred_check_branch
          %216 = sbr.rel (%p214) target = $region44
        $region43: #{coarse_matching_loss.1} parent=39 // pred_region
          %v217 = vlaneseq
          %v218 = vand.u32 %v217, 127
          %v219 = vld [vmem:[%s3] sm:$0xff]
          %v220 = vld [vmem:[%s3 + $0x8] sm:$0xff]
          %v221 = vld [vmem:[%s3 + $0x10] sm:$0xff]
          %v222 = vld [vmem:[%s3 + $0x18] sm:$0xff]
          %v223 = vld [vmem:[%s3 + $0x20] sm:$0xff]
          %v224 = vld [vmem:[%s3 + $0x28] sm:$0xff]
          %v225 = vld [vmem:[%s3 + $0x30] sm:$0xff]
          %v226 = vld [vmem:[%s3 + $0x38] sm:$0xff]
          %v227 = vld [vmem:[%s3 + $0x40] sm:$0xff]
          %v228 = vld [vmem:[%s3 + $0x48] sm:$0xff]
          %v229 = vld [vmem:[%s3 + $0x50] sm:$0xff]
          %v230 = vld [vmem:[%s3 + $0x58] sm:$0xff]
          %v231 = vld [vmem:[%s3 + $0x60] sm:$0xff]
          %v232 = vld [vmem:[%s3 + $0x68] sm:$0xff]
          %v233 = vld [vmem:[%s3 + $0x70] sm:$0xff]
          %v234 = vld [vmem:[%s3 + $0x78] sm:$0xff]
          %235 = vset.pattern.permute.xlu0 0
          %236 = vperm.xlu0 %235, %v219
          %v237 = vpop.permute.xlu0 %236
          %238 = vset.pattern.permute.xlu0 0
          %239 = vperm.xlu0 %238, %v220
          %v240 = vpop.permute.xlu0 %239
          %241 = vset.pattern.permute.xlu0 0
          %242 = vperm.xlu0 %241, %v221
          %v243 = vpop.permute.xlu0 %242
          %244 = vset.pattern.permute.xlu0 0
          %245 = vperm.xlu0 %244, %v222
          %v246 = vpop.permute.xlu0 %245
          %247 = vset.pattern.permute.xlu0 0
          %248 = vperm.xlu0 %247, %v223
          %v249 = vpop.permute.xlu0 %248
          %250 = vset.pattern.permute.xlu0 0
          %251 = vperm.xlu0 %250, %v224
          %v252 = vpop.permute.xlu0 %251
          %253 = vset.pattern.permute.xlu0 0
          %254 = vperm.xlu0 %253, %v225
          %v255 = vpop.permute.xlu0 %254
          %256 = vset.pattern.permute.xlu0 0
          %257 = vperm.xlu0 %256, %v226
          %v258 = vpop.permute.xlu0 %257
          %259 = vset.pattern.permute.xlu0 0
          %260 = vperm.xlu0 %259, %v227
          %v261 = vpop.permute.xlu0 %260
          %262 = vset.pattern.permute.xlu0 0
          %263 = vperm.xlu0 %262, %v228
          %v264 = vpop.permute.xlu0 %263
          %265 = vset.pattern.permute.xlu0 0
          %266 = vperm.xlu0 %265, %v229
          %v267 = vpop.permute.xlu0 %266
          %268 = vset.pattern.permute.xlu0 0
          %269 = vperm.xlu0 %268, %v230
          %v270 = vpop.permute.xlu0 %269
          %271 = vset.pattern.permute.xlu0 0
          %272 = vperm.xlu0 %271, %v231
          %v273 = vpop.permute.xlu0 %272
          %274 = vset.pattern.permute.xlu0 0
          %275 = vperm.xlu0 %274, %v232
          %v276 = vpop.permute.xlu0 %275
          %277 = vset.pattern.permute.xlu0 0
          %278 = vperm.xlu0 %277, %v233
          %v279 = vpop.permute.xlu0 %278
          %280 = vset.pattern.permute.xlu0 0
          %281 = vperm.xlu0 %280, %v234
          %v282 = vpop.permute.xlu0 %281
          %vm283 = vcmp.eq.s32.totalorder %v218, %v237
          %vm284 = vcmp.eq.s32.totalorder %v218, %v240
          %vm285 = vcmp.eq.s32.totalorder %v218, %v243
          %vm286 = vcmp.eq.s32.totalorder %v218, %v246
          %vm287 = vcmp.eq.s32.totalorder %v218, %v249
          %vm288 = vcmp.eq.s32.totalorder %v218, %v252
          %vm289 = vcmp.eq.s32.totalorder %v218, %v255
          %vm290 = vcmp.eq.s32.totalorder %v218, %v258
          %vm291 = vcmp.eq.s32.totalorder %v218, %v261
          %vm292 = vcmp.eq.s32.totalorder %v218, %v264
          %vm293 = vcmp.eq.s32.totalorder %v218, %v267
          %vm294 = vcmp.eq.s32.totalorder %v218, %v270
          %vm295 = vcmp.eq.s32.totalorder %v218, %v273
          %vm296 = vcmp.eq.s32.totalorder %v218, %v276
          %vm297 = vcmp.eq.s32.totalorder %v218, %v279
          %vm298 = vcmp.eq.s32.totalorder %v218, %v282
          %v299 = vld [vmem:[%s4] sm:$0xff]
          %v300 = vld [vmem:[%s4 + $0x8] sm:$0xff]
          %v301 = vld [vmem:[%s4 + $0x10] sm:$0xff]
          %v302 = vld [vmem:[%s4 + $0x18] sm:$0xff]
          %v303 = vld [vmem:[%s4 + $0x20] sm:$0xff]
          %v304 = vld [vmem:[%s4 + $0x28] sm:$0xff]
          %v305 = vld [vmem:[%s4 + $0x30] sm:$0xff]
          %v306 = vld [vmem:[%s4 + $0x38] sm:$0xff]
          %v307 = vld [vmem:[%s4 + $0x40] sm:$0xff]
          %v308 = vld [vmem:[%s4 + $0x48] sm:$0xff]
          %v309 = vld [vmem:[%s4 + $0x50] sm:$0xff]
          %v310 = vld [vmem:[%s4 + $0x58] sm:$0xff]
          %v311 = vld [vmem:[%s4 + $0x60] sm:$0xff]
          %v312 = vld [vmem:[%s4 + $0x68] sm:$0xff]
          %v313 = vld [vmem:[%s4 + $0x70] sm:$0xff]
          %v314 = vld [vmem:[%s4 + $0x78] sm:$0xff]
          %316 = vset.pattern.permute.xlu0 0
          %317 = vperm.xlu0 %316, %v299
          %v318 = vpop.permute.xlu0 %317
          %321 = vset.pattern.permute.xlu0 0
          %322 = vperm.xlu0 %321, %v300
          %v323 = vpop.permute.xlu0 %322
          %326 = vset.pattern.permute.xlu0 0
          %327 = vperm.xlu0 %326, %v301
          %v328 = vpop.permute.xlu0 %327
          %331 = vset.pattern.permute.xlu0 0
          %332 = vperm.xlu0 %331, %v302
          %v333 = vpop.permute.xlu0 %332
          %336 = vset.pattern.permute.xlu0 0
          %337 = vperm.xlu0 %336, %v303
          %v338 = vpop.permute.xlu0 %337
          %341 = vset.pattern.permute.xlu0 0
          %342 = vperm.xlu0 %341, %v304
          %v343 = vpop.permute.xlu0 %342
          %346 = vset.pattern.permute.xlu0 0
          %347 = vperm.xlu0 %346, %v305
          %v348 = vpop.permute.xlu0 %347
          %351 = vset.pattern.permute.xlu0 0
          %352 = vperm.xlu0 %351, %v306
          %v353 = vpop.permute.xlu0 %352
          %356 = vset.pattern.permute.xlu0 0
          %357 = vperm.xlu0 %356, %v307
          %v358 = vpop.permute.xlu0 %357
          %361 = vset.pattern.permute.xlu0 0
          %362 = vperm.xlu0 %361, %v308
          %v363 = vpop.permute.xlu0 %362
          %366 = vset.pattern.permute.xlu0 0
          %367 = vperm.xlu0 %366, %v309
          %v368 = vpop.permute.xlu0 %367
          %371 = vset.pattern.permute.xlu0 0
          %372 = vperm.xlu0 %371, %v310
          %v373 = vpop.permute.xlu0 %372
          %376 = vset.pattern.permute.xlu0 0
          %377 = vperm.xlu0 %376, %v311
          %v378 = vpop.permute.xlu0 %377
          %381 = vset.pattern.permute.xlu0 0
          %382 = vperm.xlu0 %381, %v312
          %v383 = vpop.permute.xlu0 %382
          %386 = vset.pattern.permute.xlu0 0
          %387 = vperm.xlu0 %386, %v313
          %v388 = vpop.permute.xlu0 %387
          %391 = vset.pattern.permute.xlu0 0
          %392 = vperm.xlu0 %391, %v314
          %v393 = vpop.permute.xlu0 %392
          %v395 = vsel %vm283, %v318, 0.0
          %v396 = vsel %vm284, %v323, 0.0
          %v397 = vsel %vm285, %v328, 0.0
          %v398 = vsel %vm286, %v333, 0.0
          %v399 = vsel %vm287, %v338, 0.0
          %v400 = vsel %vm288, %v343, 0.0
          %v401 = vsel %vm289, %v348, 0.0
          %v402 = vsel %vm290, %v353, 0.0
          %v403 = vsel %vm291, %v358, 0.0
          %v404 = vsel %vm292, %v363, 0.0
          %v405 = vsel %vm293, %v368, 0.0
          %v406 = vsel %vm294, %v373, 0.0
          %v407 = vsel %vm295, %v378, 0.0
          %v408 = vsel %vm296, %v383, 0.0
          %v409 = vsel %vm297, %v388, 0.0
          %v410 = vsel %vm298, %v393, 0.0
          %411 = vst [vmem:[#allocation2] sm:$0xff] %v395
          %412 = vst [vmem:[#allocation2 + $0x8] sm:$0xff] %v396
          %413 = vst [vmem:[#allocation2 + $0x10] sm:$0xff] %v397
          %414 = vst [vmem:[#allocation2 + $0x18] sm:$0xff] %v398
          %415 = vst [vmem:[#allocation2 + $0x20] sm:$0xff] %v399
          %416 = vst [vmem:[#allocation2 + $0x28] sm:$0xff] %v400
          %417 = vst [vmem:[#allocation2 + $0x30] sm:$0xff] %v401
          %418 = vst [vmem:[#allocation2 + $0x38] sm:$0xff] %v402
          %419 = vst [vmem:[#allocation2 + $0x40] sm:$0xff] %v403
          %420 = vst [vmem:[#allocation2 + $0x48] sm:$0xff] %v404
          %421 = vst [vmem:[#allocation2 + $0x50] sm:$0xff] %v405
          %422 = vst [vmem:[#allocation2 + $0x58] sm:$0xff] %v406
          %423 = vst [vmem:[#allocation2 + $0x60] sm:$0xff] %v407
          %424 = vst [vmem:[#allocation2 + $0x68] sm:$0xff] %v408
          %425 = vst [vmem:[#allocation2 + $0x70] sm:$0xff] %v409
          %426 = vst [vmem:[#allocation2 + $0x78] sm:$0xff] %v410
          %427 = vst [vmem:[#allocation3] sm:$0xff] 0.0
          %428 = vst [vmem:[#allocation4] sm:$0xff] 0.0
          %429 = vst [vmem:[#allocation5] sm:$0xff] 0.0
          %430 = vst [vmem:[#allocation6] sm:$0xff] 0.0
          %vm431 = vcmask 7168
          %432 = vst.msk [vmem:[#allocation7] sm:$0xff] %vm431, 0.0
          %433 = vst.msk [vmem:[#allocation7 + $0x8] sm:$0xff] %vm431, 0.0
          %434 = vst.msk [vmem:[#allocation7 + $0x10] sm:$0xff] %vm431, 0.0
          %435 = vst.msk [vmem:[#allocation7 + $0x18] sm:$0xff] %vm431, 0.0
          %436 = vst.msk [vmem:[#allocation8] sm:$0xff] %vm431, 0.0
          %437 = vst.msk [vmem:[#allocation8 + $0x8] sm:$0xff] %vm431, 0.0
          %438 = vst.msk [vmem:[#allocation8 + $0x10] sm:$0xff] %vm431, 0.0
          %439 = vst.msk [vmem:[#allocation8 + $0x18] sm:$0xff] %vm431, 0.0
        $region44: #{coarse_matching_loss.1} parent=39 // pred_fallthru
          _
        %v440 = vld [vmem:[%s211] sm:$0xff]
        %v441 = vld [vmem:[%s211 + $0x8] sm:$0xff]
        %v442 = vld [vmem:[%s211 + $0x10] sm:$0xff]
        %v443 = vld [vmem:[%s211 + $0x18] sm:$0xff]
        %v444 = vld [vmem:[%s1] sm:$0xff]
        %v445 = vld [vmem:[%s1 + $0x8] sm:$0xff]
        %v446 = vld [vmem:[%s1 + $0x10] sm:$0xff]
        %v447 = vld [vmem:[%s1 + $0x18] sm:$0xff]
        %vm448 = vcmask 261120
        %v450 = vsel %vm448, %v440, 0
        %v453 = vsel %vm448, %v441, 0
        %v456 = vsel %vm448, %v442, 0
        %v459 = vsel %vm448, %v443, 0
        %461 = vmatprep.subr.mxu0 0.0
        %462 = vmatpush1.msra.mxu0 %v444
        %463 = vmatprep.subr.mxu0 0.0
        %464 = vmatpush1.msra.mxu0 %v445
        %465 = vmatprep.subr.mxu0 0.0
        %466 = vmatpush1.msra.mxu0 %v446
        %467 = vmatprep.subr.mxu0 0.0
        %468 = vmatpush1.msra.mxu0 %v447
        %469 = vmatprep.subr.mxu0 0.0
        %470 = vmatpush1.msra.mxu0 0.0
        %471 = vmatprep.subr.mxu0 0.0
        %472 = vmatpush1.msra.mxu0 0.0
        %473 = vmatprep.subr.mxu0 0.0
        %474 = vmatpush1.msra.mxu0 0.0
        %475 = vmatprep.subr.mxu0 0.0
        %476 = vmatpush1.msra.mxu0 0.0
        %477 = vmatprep.subr.mxu0 0.0
        %478 = vmatpush1.msra.mxu0 0.0
        %479 = vmatprep.subr.mxu0 0.0
        %480 = vmatpush1.msra.mxu0 0.0
        %481 = vmatprep.subr.mxu0 0.0
        %482 = vmatpush1.msra.mxu0 0.0
        %483 = vmatprep.subr.mxu0 0.0
        %484 = vmatpush1.msra.mxu0 0.0
        %485 = vmatprep.subr.mxu0 0.0
        %486 = vmatpush1.msra.mxu0 0.0
        %487 = vmatprep.subr.mxu0 0.0
        %488 = vmatpush1.msra.mxu0 0.0
        %489 = vmatprep.subr.mxu0 0.0
        %490 = vmatpush1.msra.mxu0 0.0
        %491 = vmatprep.subr.mxu0 0.0
        %492 = vmatpush1.msra.mxu0 0.0
        %493 = vmatprep.subr.mxu0 0.0
        %494 = vmatpush1.msra.mxu0 0.0
        %495 = vmatprep.subr.mxu0 0.0
        %496 = vmatpush1.msra.mxu0 0.0
        %497 = vmatprep.subr.mxu0 0.0
        %498 = vmatpush1.msra.mxu0 0.0
        %499 = vmatprep.subr.mxu0 0.0
        %500 = vmatpush1.msra.mxu0 0.0
        %501 = vmatprep.subr.mxu0 0.0
        %502 = vmatpush1.msra.mxu0 0.0
        %503 = vmatprep.subr.mxu0 0.0
        %504 = vmatpush1.msra.mxu0 0.0
        %505 = vmatprep.subr.mxu0 0.0
        %506 = vmatpush1.msra.mxu0 0.0
        %507 = vmatprep.subr.mxu0 0.0
        %508 = vmatpush1.msra.mxu0 0.0
        %509 = vmatprep.subr.mxu0 0.0
        %510 = vmatpush1.msra.mxu0 0.0
        %511 = vmatprep.subr.mxu0 0.0
        %512 = vmatpush1.msra.mxu0 0.0
        %513 = vmatprep.subr.mxu0 0.0
        %514 = vmatpush1.msra.mxu0 0.0
        %515 = vmatprep.subr.mxu0 0.0
        %516 = vmatpush1.msra.mxu0 0.0
        %517 = vmatprep.subr.mxu0 0.0
        %518 = vmatpush1.msra.mxu0 0.0
        %519 = vmatprep.subr.mxu0 0.0
        %520 = vmatpush1.msra.mxu0 0.0
        %521 = vmatprep.subr.mxu0 0.0
        %522 = vmatpush1.msra.mxu0 0.0
        %523 = vmatprep.subr.mxu0 0.0
        %524 = vmatpush1.msra.mxu0 0.0
        %525 = vmatprep.mubr.f32.mxu0 0.0
        %526 = vmatmul.mubr.f32.gmra.mrb[0].mxu0 %v450
        %v527 = vpop.f32.mrb[0].mxu0
        %v528 = vadd.f32 0.0, %v527
        %v529 = vpop.f32.mrb[0].mxu0
        %530 = vmatprep.mubr.f32.mxu0 0.0
        %531 = vmatmul.mubr.f32.gmra.mrb[0].mxu0 %v453
        %v532 = vpop.f32.mrb[0].mxu0
        %v533 = vadd.f32 0.0, %v532
        %v534 = vpop.f32.mrb[0].mxu0
        %535 = vmatprep.mubr.f32.mxu0 0.0
        %536 = vmatmul.mubr.f32.gmra.mrb[0].mxu0 %v456
        %v537 = vpop.f32.mrb[0].mxu0
        %v538 = vadd.f32 0.0, %v537
        %v539 = vpop.f32.mrb[0].mxu0
        %540 = vmatprep.mubr.f32.mxu0 0.0
        %541 = vmatmul.mubr.f32.gmra.mrb[0].mxu0 %v459
        %v542 = vpop.f32.mrb[0].mxu0
        %v543 = vadd.f32 0.0, %v542
        %v544 = vpop.f32.mrb[0].mxu0
        %545 = vdwg.mxu0
        %v546 = vmul.f32 %v528, 2.0
        %v547 = vmul.f32 %v533, 2.0
        %v548 = vmul.f32 %v538, 2.0
        %v549 = vmul.f32 %v543, 2.0
        %v550 = vsub.f32 2.0, %v546
        %v551 = vsub.f32 2.0, %v547
        %v552 = vsub.f32 2.0, %v548
        %v553 = vsub.f32 2.0, %v549
        %v554 = vmax.f32 %v550, 0.0
        %v555 = vmax.f32 %v551, 0.0
        %v556 = vmax.f32 %v552, 0.0
        %v557 = vmax.f32 %v553, 0.0
        %v558 = vrsqrt.pop %v554
        %v559 = vmul.f32 %v554, %v558
        %vm560 = vcmp.eq.f32.partialorder %v554, inf
        %v561 = vsel %vm560, %v554, %v559
        %vm562 = vcmp.eq.f32.partialorder %v554, 0.0
        %v563 = vand.u32 %v554, 2147483648
        %v564 = vsel %vm562, %v563, %v561
        %v565 = vrsqrt.pop %v555
        %v566 = vmul.f32 %v555, %v565
        %vm567 = vcmp.eq.f32.partialorder %v555, inf
        %v568 = vsel %vm567, %v555, %v566
        %vm569 = vcmp.eq.f32.partialorder %v555, 0.0
        %v570 = vand.u32 %v555, 2147483648
        %v571 = vsel %vm569, %v570, %v568
        %v572 = vrsqrt.pop %v556
        %v573 = vmul.f32 %v556, %v572
        %vm574 = vcmp.eq.f32.partialorder %v556, inf
        %v575 = vsel %vm574, %v556, %v573
        %vm576 = vcmp.eq.f32.partialorder %v556, 0.0
        %v577 = vand.u32 %v556, 2147483648
        %v578 = vsel %vm576, %v577, %v575
        %v579 = vrsqrt.pop %v557
        %v580 = vmul.f32 %v557, %v579
        %vm581 = vcmp.eq.f32.partialorder %v557, inf
        %v582 = vsel %vm581, %v557, %v580
        %vm583 = vcmp.eq.f32.partialorder %v557, 0.0
        %v584 = vand.u32 %v557, 2147483648
        %v585 = vsel %vm583, %v584, %v582
        %s586 = smul.u32 %s17, 32
        %v587 = vlaneseq
        %v588 = vshrl.u32 %v587, 7
        %v589 = vadd.s32 %v588, 8
        %v590 = vadd.s32 %v588, 16
        %v591 = vadd.s32 %v588, 24
        %v592 = vstv %s586
        %v593 = vadd.s32 %v592, %v588
        %v594 = vadd.s32 %v592, %v589
        %v595 = vadd.s32 %v592, %v590
        %v596 = vadd.s32 %v592, %v591
        %v597 = vld [vmem:[%s2] sm:$0x1]
        %v598 = vlaneseq
        %v599 = vshrl.u32 %v598, 7
        %v600 = vsub.s32 0, %v599
        %v601 = vrot.slane %v597, %v600
        %vm602 = vcmp.eq.s32.totalorder %v601, %v593
        %vm603 = vcmp.eq.s32.totalorder %v601, %v594
        %vm604 = vcmp.eq.s32.totalorder %v601, %v595
        %vm605 = vcmp.eq.s32.totalorder %v601, %v596
        %v606 = vsel %vm602, 1, 0
        %v607 = vsel %vm603, 1, 0
        %v608 = vsel %vm604, 1, 0
        %v609 = vsel %vm605, 1, 0
        %v610 = vcvt.s32.f32 %v606
        %v611 = vcvt.s32.f32 %v607
        %v612 = vcvt.s32.f32 %v608
        %v613 = vcvt.s32.f32 %v609
        %v614 = vld [vmem:[#allocation2] sm:$0xff]
        %v615 = vld [vmem:[#allocation2 + $0x8] sm:$0xff]
        %v616 = vld [vmem:[#allocation2 + $0x10] sm:$0xff]
        %v617 = vld [vmem:[#allocation2 + $0x18] sm:$0xff]
        %v618 = vld [vmem:[#allocation2 + $0x20] sm:$0xff]
        %v619 = vld [vmem:[#allocation2 + $0x28] sm:$0xff]
        %v620 = vld [vmem:[#allocation2 + $0x30] sm:$0xff]
        %v621 = vld [vmem:[#allocation2 + $0x38] sm:$0xff]
        %v622 = vld [vmem:[#allocation2 + $0x40] sm:$0xff]
        %v623 = vld [vmem:[#allocation2 + $0x48] sm:$0xff]
        %v624 = vld [vmem:[#allocation2 + $0x50] sm:$0xff]
        %v625 = vld [vmem:[#allocation2 + $0x58] sm:$0xff]
        %v626 = vld [vmem:[#allocation2 + $0x60] sm:$0xff]
        %v627 = vld [vmem:[#allocation2 + $0x68] sm:$0xff]
        %v628 = vld [vmem:[#allocation2 + $0x70] sm:$0xff]
        %v629 = vld [vmem:[#allocation2 + $0x78] sm:$0xff]
        %630 = vmatprep.subr.mxu0 0.0
        %631 = vmatpush1.msra.mxu0 %v614
        %632 = vmatprep.subr.mxu0 0.0
        %633 = vmatpush1.msra.mxu0 %v615
        %634 = vmatprep.subr.mxu0 0.0
        %635 = vmatpush1.msra.mxu0 %v616
        %636 = vmatprep.subr.mxu0 0.0
        %637 = vmatpush1.msra.mxu0 %v617
        %638 = vmatprep.subr.mxu0 0.0
        %639 = vmatpush1.msra.mxu0 %v618
        %640 = vmatprep.subr.mxu0 0.0
        %641 = vmatpush1.msra.mxu0 %v619
        %642 = vmatprep.subr.mxu0 0.0
        %643 = vmatpush1.msra.mxu0 %v620
        %644 = vmatprep.subr.mxu0 0.0
        %645 = vmatpush1.msra.mxu0 %v621
        %646 = vmatprep.subr.mxu0 0.0
        %647 = vmatpush1.msra.mxu0 %v622
        %648 = vmatprep.subr.mxu0 0.0
        %649 = vmatpush1.msra.mxu0 %v623
        %650 = vmatprep.subr.mxu0 0.0
        %651 = vmatpush1.msra.mxu0 %v624
        %652 = vmatprep.subr.mxu0 0.0
        %653 = vmatpush1.msra.mxu0 %v625
        %654 = vmatprep.subr.mxu0 0.0
        %655 = vmatpush1.msra.mxu0 %v626
        %656 = vmatprep.subr.mxu0 0.0
        %657 = vmatpush1.msra.mxu0 %v627
        %658 = vmatprep.subr.mxu0 0.0
        %659 = vmatpush1.msra.mxu0 %v628
        %660 = vmatprep.subr.mxu0 0.0
        %661 = vmatpush1.msra.mxu0 %v629
        %662 = vmatprep.subr.mxu0 0.0
        %663 = vmatpush1.msra.mxu0 0.0
        %664 = vmatprep.subr.mxu0 0.0
        %665 = vmatpush1.msra.mxu0 0.0
        %666 = vmatprep.subr.mxu0 0.0
        %667 = vmatpush1.msra.mxu0 0.0
        %668 = vmatprep.subr.mxu0 0.0
        %669 = vmatpush1.msra.mxu0 0.0
        %670 = vmatprep.subr.mxu0 0.0
        %671 = vmatpush1.msra.mxu0 0.0
        %672 = vmatprep.subr.mxu0 0.0
        %673 = vmatpush1.msra.mxu0 0.0
        %674 = vmatprep.subr.mxu0 0.0
        %675 = vmatpush1.msra.mxu0 0.0
        %676 = vmatprep.subr.mxu0 0.0
        %677 = vmatpush1.msra.mxu0 0.0
        %678 = vmatprep.subr.mxu0 0.0
        %679 = vmatpush1.msra.mxu0 0.0
        %680 = vmatprep.subr.mxu0 0.0
        %681 = vmatpush1.msra.mxu0 0.0
        %682 = vmatprep.subr.mxu0 0.0
        %683 = vmatpush1.msra.mxu0 0.0
        %684 = vmatprep.subr.mxu0 0.0
        %685 = vmatpush1.msra.mxu0 0.0
        %686 = vmatprep.subr.mxu0 0.0
        %687 = vmatpush1.msra.mxu0 0.0
        %688 = vmatprep.subr.mxu0 0.0
        %689 = vmatpush1.msra.mxu0 0.0
        %690 = vmatprep.subr.mxu0 0.0
        %691 = vmatpush1.msra.mxu0 0.0
        %692 = vmatprep.subr.mxu0 0.0
        %693 = vmatpush1.msra.mxu0 0.0
        %694 = vmatprep.mubr.f32.mxu0 0.0
        %695 = vmatmul.mubr.f32.gmra.mrb[0].mxu0 %v610
        %v696 = vpop.f32.mrb[0].mxu0
        %v697 = vadd.f32 0.0, %v696
        %v698 = vpop.f32.mrb[0].mxu0
        %699 = vmatprep.mubr.f32.mxu0 0.0
        %700 = vmatmul.mubr.f32.gmra.mrb[0].mxu0 %v611
        %v701 = vpop.f32.mrb[0].mxu0
        %v702 = vadd.f32 0.0, %v701
        %v703 = vpop.f32.mrb[0].mxu0
        %704 = vmatprep.mubr.f32.mxu0 0.0
        %705 = vmatmul.mubr.f32.gmra.mrb[0].mxu0 %v612
        %v706 = vpop.f32.mrb[0].mxu0
        %v707 = vadd.f32 0.0, %v706
        %v708 = vpop.f32.mrb[0].mxu0
        %709 = vmatprep.mubr.f32.mxu0 0.0
        %710 = vmatmul.mubr.f32.gmra.mrb[0].mxu0 %v613
        %v711 = vpop.f32.mrb[0].mxu0
        %v712 = vadd.f32 0.0, %v711
        %v713 = vpop.f32.mrb[0].mxu0
        %714 = vdwg.mxu0
        %vm715 = vcmp.gt.f32.partialorder %v697, 0.31622776
        %vm716 = vcmp.gt.f32.partialorder %v702, 0.31622776
        %vm717 = vcmp.gt.f32.partialorder %v707, 0.31622776
        %vm718 = vcmp.gt.f32.partialorder %v712, 0.31622776
        %v719 = vsel %vm715, 1, 0
        %v720 = vsel %vm716, 1, 0
        %v721 = vsel %vm717, 1, 0
        %v722 = vsel %vm718, 1, 0
        %v723 = vcvt.s32.f32 %v719
        %v724 = vcvt.s32.f32 %v720
        %v725 = vcvt.s32.f32 %v721
        %v726 = vcvt.s32.f32 %v722
        %vm727 = vcmp.eq.f32.partialorder %v697, 0.0
        %vm728 = vcmp.eq.f32.partialorder %v702, 0.0
        %vm729 = vcmp.eq.f32.partialorder %v707, 0.0
        %vm730 = vcmp.eq.f32.partialorder %v712, 0.0
        %v731 = vsel %vm727, 1, 0
        %v732 = vsel %vm728, 1, 0
        %v733 = vsel %vm729, 1, 0
        %v734 = vsel %vm730, 1, 0
        %v735 = vcvt.s32.f32 %v731
        %v736 = vcvt.s32.f32 %v732
        %v737 = vcvt.s32.f32 %v733
        %v738 = vcvt.s32.f32 %v734
        %v739 = vsub.f32 %v564, 0.1
        %v740 = vsub.f32 %v571, 0.1
        %v741 = vsub.f32 %v578, 0.1
        %v742 = vsub.f32 %v585, 0.1
        %v743 = vmax.f32 %v739, 0.0
        %v744 = vmax.f32 %v740, 0.0
        %v745 = vmax.f32 %v741, 0.0
        %v746 = vmax.f32 %v742, 0.0
        %v747 = vmul.f32 %v697, %v723
        %v748 = vmul.f32 %v702, %v724
        %v749 = vmul.f32 %v707, %v725
        %v750 = vmul.f32 %v712, %v726
        %v751 = vmul.f32 %v743, %v747
        %v752 = vmul.f32 %v744, %v748
        %v753 = vmul.f32 %v745, %v749
        %v754 = vmul.f32 %v746, %v750
        %v755 = vsub.f32 1.4, %v564
        %v756 = vsub.f32 1.4, %v571
        %v757 = vsub.f32 1.4, %v578
        %v758 = vsub.f32 1.4, %v585
        %v759 = vmax.f32 %v755, 0.0
        %v760 = vmax.f32 %v756, 0.0
        %v761 = vmax.f32 %v757, 0.0
        %v762 = vmax.f32 %v758, 0.0
        %v763 = vmul.f32 %v759, %v735
        %v764 = vmul.f32 %v760, %v736
        %v765 = vmul.f32 %v761, %v737
        %v766 = vmul.f32 %v762, %v738
        %v767 = vmul.f32 %v739, 24.0
        %v768 = vmul.f32 %v740, 24.0
        %v769 = vmul.f32 %v741, 24.0
        %v770 = vmul.f32 %v742, 24.0
        %v771 = vmul.f32 %v767, %v751
        %v772 = vmul.f32 %v768, %v752
        %v773 = vmul.f32 %v769, %v753
        %v774 = vmul.f32 %v770, %v754
        %v775 = vmul.f32 %v755, 24.0
        %v776 = vmul.f32 %v756, 24.0
        %v777 = vmul.f32 %v757, 24.0
        %v778 = vmul.f32 %v758, 24.0
        %v779 = vmul.f32 %v775, %v763
        %v780 = vmul.f32 %v776, %v764
        %v781 = vmul.f32 %v777, %v765
        %v782 = vmul.f32 %v778, %v766
        %v783 = vsub.f32 %v771, 40.0
        %v784 = vsub.f32 %v772, 40.0
        %v785 = vsub.f32 %v773, 40.0
        %v786 = vsub.f32 %v774, 40.0
        %v787 = vmul.f32 %v783, 1.442695
        %v788 = vpow.pop %v787
        %v789 = vmul.f32 %v784, 1.442695
        %v790 = vpow.pop %v789
        %v791 = vmul.f32 %v785, 1.442695
        %v792 = vpow.pop %v791
        %v793 = vmul.f32 %v786, 1.442695
        %v794 = vpow.pop %v793
        %v795 = vsub.f32 %v779, 24.0
        %v796 = vsub.f32 %v780, 24.0
        %v797 = vsub.f32 %v781, 24.0
        %v798 = vsub.f32 %v782, 24.0
        %v799 = vmul.f32 %v795, 1.442695
        %v800 = vpow.pop %v799
        %v801 = vmul.f32 %v796, 1.442695
        %v802 = vpow.pop %v801
        %v803 = vmul.f32 %v797, 1.442695
        %v804 = vpow.pop %v803
        %v805 = vmul.f32 %v798, 1.442695
        %v806 = vpow.pop %v805
        %807 = vadd.xlane.f32.xlu0 %v788
        %v808 = vpop.xlane.xlu0 %807
        %809 = vadd.xlane.f32.xlu0 %v790
        %v810 = vpop.xlane.xlu0 %809
        %811 = vadd.xlane.f32.xlu0 %v792
        %v812 = vpop.xlane.xlu0 %811
        %813 = vadd.xlane.f32.xlu0 %v794
        %v814 = vpop.xlane.xlu0 %813
        %815 = vadd.xlane.f32.xlu0 %v800
        %v816 = vpop.xlane.xlu0 %815
        %817 = vadd.xlane.f32.xlu0 %v802
        %v818 = vpop.xlane.xlu0 %817
        %819 = vadd.xlane.f32.xlu0 %v804
        %v820 = vpop.xlane.xlu0 %819
        %821 = vadd.xlane.f32.xlu0 %v806
        %v822 = vpop.xlane.xlu0 %821
        %823 = vadd.xlane.f32.xlu0 %v723
        %v824 = vpop.xlane.xlu0 %823
        %825 = vadd.xlane.f32.xlu0 %v724
        %v826 = vpop.xlane.xlu0 %825
        %827 = vadd.xlane.f32.xlu0 %v725
        %v828 = vpop.xlane.xlu0 %827
        %829 = vadd.xlane.f32.xlu0 %v726
        %v830 = vpop.xlane.xlu0 %829
        %831 = vadd.xlane.f32.xlu0 %v735
        %v832 = vpop.xlane.xlu0 %831
        %833 = vadd.xlane.f32.xlu0 %v736
        %v834 = vpop.xlane.xlu0 %833
        %835 = vadd.xlane.f32.xlu0 %v737
        %v836 = vpop.xlane.xlu0 %835
        %837 = vadd.xlane.f32.xlu0 %v738
        %v838 = vpop.xlane.xlu0 %837
        %v839 = vsub.f32 %v808, 3.3562e-16
        %v840 = vsub.f32 %v810, 3.3562e-16
        %v841 = vsub.f32 %v812, 3.3562e-16
        %v842 = vsub.f32 %v814, 3.3562e-16
        %v843 = vmax.f32 %v839, 1e-30
        %v844 = vmax.f32 %v840, 1e-30
        %v845 = vmax.f32 %v841, 1e-30
        %v846 = vmax.f32 %v842, 1e-30
        %v847 = vsub.f32 %v816, 2.9823564e-09
        %v848 = vsub.f32 %v818, 2.9823564e-09
        %v849 = vsub.f32 %v820, 2.9823564e-09
        %v850 = vsub.f32 %v822, 2.9823564e-09
        %v851 = vmax.f32 %v847, 1e-30
        %v852 = vmax.f32 %v848, 1e-30
        %v853 = vmax.f32 %v849, 1e-30
        %v854 = vmax.f32 %v850, 1e-30
        %v855 = vsub.f32 %v832, 79.0
        %v856 = vsub.f32 %v834, 79.0
        %v857 = vsub.f32 %v836, 79.0
        %v858 = vsub.f32 %v838, 79.0
        %v859 = vlog2.pop %v843
        %v860 = vmul.f32 %v859, 0.6931472
        %v861 = vlog2.pop %v844
        %v862 = vmul.f32 %v861, 0.6931472
        %v863 = vlog2.pop %v845
        %v864 = vmul.f32 %v863, 0.6931472
        %v865 = vlog2.pop %v846
        %v866 = vmul.f32 %v865, 0.6931472
        %v867 = vadd.f32 %v860, 40.0
        %v868 = vadd.f32 %v862, 40.0
        %v869 = vadd.f32 %v864, 40.0
        %v870 = vadd.f32 %v866, 40.0
        %v871 = vlog2.pop %v851
        %v872 = vmul.f32 %v871, 0.6931472
        %v873 = vlog2.pop %v852
        %v874 = vmul.f32 %v873, 0.6931472
        %v875 = vlog2.pop %v853
        %v876 = vmul.f32 %v875, 0.6931472
        %v877 = vlog2.pop %v854
        %v878 = vmul.f32 %v877, 0.6931472
        %v879 = vadd.f32 %v872, 24.0
        %v880 = vadd.f32 %v874, 24.0
        %v881 = vadd.f32 %v876, 24.0
        %v882 = vadd.f32 %v878, 24.0
        %v883 = vadd.f32 %v867, %v879
        %v884 = vadd.f32 %v868, %v880
        %v885 = vadd.f32 %v869, %v881
        %v886 = vadd.f32 %v870, %v882
        %v887 = vmax.f32 %v883, 0.0
        %v888 = vmax.f32 %v884, 0.0
        %v889 = vmax.f32 %v885, 0.0
        %v890 = vmax.f32 %v886, 0.0
        %v891 = vand.u32 2147483647, %v883
        %v892 = vand.u32 2147483647, %v884
        %v893 = vand.u32 2147483647, %v885
        %v894 = vand.u32 2147483647, %v886
        %v895 = vsub.f32 0.0, %v891
        %v896 = vsub.f32 0.0, %v892
        %v897 = vsub.f32 0.0, %v893
        %v898 = vsub.f32 0.0, %v894
        %v899 = vmul.f32 %v895, 1.442695
        %v900 = vpow.pop %v899
        %v901 = vmul.f32 %v896, 1.442695
        %v902 = vpow.pop %v901
        %v903 = vmul.f32 %v897, 1.442695
        %v904 = vpow.pop %v903
        %v905 = vmul.f32 %v898, 1.442695
        %v906 = vpow.pop %v905
        %v907 = vadd.f32 %v900, 1.0
        %v908 = vadd.f32 %v902, 1.0
        %v909 = vadd.f32 %v904, 1.0
        %v910 = vadd.f32 %v906, 1.0
        %v911 = vlog2.pop %v907
        %v912 = vmul.f32 %v911, 0.6931472
        %v913 = vlog2.pop %v908
        %v914 = vmul.f32 %v913, 0.6931472
        %v915 = vlog2.pop %v909
        %v916 = vmul.f32 %v915, 0.6931472
        %v917 = vlog2.pop %v910
        %v918 = vmul.f32 %v917, 0.6931472
        %v919 = vadd.f32 %v887, %v912
        %v920 = vadd.f32 %v888, %v914
        %v921 = vadd.f32 %v889, %v916
        %v922 = vadd.f32 %v890, %v918
        %v923 = vmul.f32 %v919, 0.041666668
        %v924 = vmul.f32 %v920, 0.041666668
        %v925 = vmul.f32 %v921, 0.041666668
        %v926 = vmul.f32 %v922, 0.041666668
        %vm927 = vcmp.gt.f32.partialorder %v824, 0.0
        %vm928 = vcmp.gt.f32.partialorder %v826, 0.0
        %vm929 = vcmp.gt.f32.partialorder %v828, 0.0
        %vm930 = vcmp.gt.f32.partialorder %v830, 0.0
        %vm931 = vcmp.gt.f32.partialorder %v855, 0.0
        %vm932 = vcmp.gt.f32.partialorder %v856, 0.0
        %vm933 = vcmp.gt.f32.partialorder %v857, 0.0
        %vm934 = vcmp.gt.f32.partialorder %v858, 0.0
        %vm935 = vmand %vm927, %vm931
        %vm936 = vmand %vm928, %vm932
        %vm937 = vmand %vm929, %vm933
        %vm938 = vmand %vm930, %vm934
        %v939 = vsel %vm935, 1, 0
        %v940 = vsel %vm936, 1, 0
        %v941 = vsel %vm937, 1, 0
        %v942 = vsel %vm938, 1, 0
        %v943 = vcvt.s32.f32 %v939
        %v944 = vcvt.s32.f32 %v940
        %v945 = vcvt.s32.f32 %v941
        %v946 = vcvt.s32.f32 %v942
        %v947 = vld [vmem:[#allocation7] sm:$0xff]
        %v948 = vld [vmem:[#allocation7 + $0x8] sm:$0xff]
        %v949 = vld [vmem:[#allocation7 + $0x10] sm:$0xff]
        %v950 = vld [vmem:[#allocation7 + $0x18] sm:$0xff]
        %v951 = vmul.f32 %v923, %v943
        %v952 = vmul.f32 %v924, %v944
        %v953 = vmul.f32 %v925, %v945
        %v954 = vmul.f32 %v926, %v946
        %v955 = vadd.f32 %v947, %v951
        %v956 = vadd.f32 %v948, %v952
        %v957 = vadd.f32 %v949, %v953
        %v958 = vadd.f32 %v950, %v954
        %vm959 = vcmask 7168
        %960 = vst.msk [vmem:[#allocation7] sm:$0xff] %vm959, %v955
        %961 = vst.msk [vmem:[#allocation7 + $0x8] sm:$0xff] %vm959, %v956
        %962 = vst.msk [vmem:[#allocation7 + $0x10] sm:$0xff] %vm959, %v957
        %963 = vst.msk [vmem:[#allocation7 + $0x18] sm:$0xff] %vm959, %v958
        %v964 = vld [vmem:[#allocation8] sm:$0xff]
        %v965 = vld [vmem:[#allocation8 + $0x8] sm:$0xff]
        %v966 = vld [vmem:[#allocation8 + $0x10] sm:$0xff]
        %v967 = vld [vmem:[#allocation8 + $0x18] sm:$0xff]
        %v968 = vadd.f32 %v964, %v943
        %v969 = vadd.f32 %v965, %v944
        %v970 = vadd.f32 %v966, %v945
        %v971 = vadd.f32 %v967, %v946
        %972 = vst.msk [vmem:[#allocation8] sm:$0xff] %vm959, %v968
        %973 = vst.msk [vmem:[#allocation8 + $0x8] sm:$0xff] %vm959, %v969
        %974 = vst.msk [vmem:[#allocation8 + $0x10] sm:$0xff] %vm959, %v970
        %975 = vst.msk [vmem:[#allocation8 + $0x18] sm:$0xff] %vm959, %v971
        %v976 = vld [vmem:[#allocation3] sm:$0xff]
        %v977 = vadd.f32 %v788, %v790
        %v978 = vadd.f32 %v977, %v792
        %v979 = vadd.f32 %v978, %v794
        %v980 = vadd.f32 %v976, %v979
        %981 = vst [vmem:[#allocation3] sm:$0xff] %v980
        %v982 = vld [vmem:[#allocation4] sm:$0xff]
        %v983 = vadd.f32 %v800, %v802
        %v984 = vadd.f32 %v983, %v804
        %v985 = vadd.f32 %v984, %v806
        %v986 = vadd.f32 %v982, %v985
        %987 = vst [vmem:[#allocation4] sm:$0xff] %v986
        %v988 = vld [vmem:[#allocation5] sm:$0xff]
        %v989 = vadd.f32 %v723, %v724
        %v990 = vadd.f32 %v989, %v725
        %v991 = vadd.f32 %v990, %v726
        %v992 = vadd.f32 %v988, %v991
        %993 = vst [vmem:[#allocation5] sm:$0xff] %v992
        %v994 = vld [vmem:[#allocation6] sm:$0xff]
        %v995 = vadd.f32 %v735, %v736
        %v996 = vadd.f32 %v995, %v737
        %v997 = vadd.f32 %v996, %v738
        %v998 = vadd.f32 %v994, %v997
        %999 = vst [vmem:[#allocation6] sm:$0xff] %v998
        %p1000 = scmp.eq.s32.totalorder %s17, 1
        // Predicated region
        $region45: #{coarse_matching_loss.1} parent=39 // pred_check
          %p1001 = pneg %p1000
        $region46: #{coarse_matching_loss.1} parent=39 // pred_check_branch
          %1003 = sbr.rel (%p1001) target = $region48
        $region47: #{coarse_matching_loss.1} parent=39 // pred_region
          %v1004 = vld [vmem:[#allocation3] sm:$0xff]
          %v1005 = vrot.slane %v1004, 4
          %v1006 = vadd.f32 %v1004, %v1005
          %v1007 = vrot.slane %v1006, 2
          %v1008 = vadd.f32 %v1006, %v1007
          %v1009 = vrot.slane %v1008, 1
          %v1010 = vadd.f32 %v1008, %v1009
          %v1011 = vld [vmem:[#allocation4] sm:$0xff]
          %v1012 = vrot.slane %v1011, 4
          %v1013 = vadd.f32 %v1011, %v1012
          %v1014 = vrot.slane %v1013, 2
          %v1015 = vadd.f32 %v1013, %v1014
          %v1016 = vrot.slane %v1015, 1
          %v1017 = vadd.f32 %v1015, %v1016
          %v1018 = vld [vmem:[#allocation5] sm:$0xff]
          %v1019 = vrot.slane %v1018, 4
          %v1020 = vadd.f32 %v1018, %v1019
          %v1021 = vrot.slane %v1020, 2
          %v1022 = vadd.f32 %v1020, %v1021
          %v1023 = vrot.slane %v1022, 1
          %v1024 = vadd.f32 %v1022, %v1023
          %v1025 = vld [vmem:[#allocation6] sm:$0xff]
          %v1026 = vrot.slane %v1025, 4
          %v1027 = vadd.f32 %v1025, %v1026
          %v1028 = vrot.slane %v1027, 2
          %v1029 = vadd.f32 %v1027, %v1028
          %v1030 = vrot.slane %v1029, 1
          %v1031 = vadd.f32 %v1029, %v1030
          %v1032 = vsub.f32 %v1010, 1.6993417e-17
          %v1033 = vmax.f32 %v1032, 1e-30
          %v1034 = vsub.f32 %v1017, 1.5100537e-10
          %v1035 = vmax.f32 %v1034, 1e-30
          %v1036 = vsub.f32 %v1031, 4.0
          %v1037 = vlog2.pop %v1033
          %v1038 = vmul.f32 %v1037, 0.6931472
          %v1039 = vadd.f32 %v1038, 40.0
          %v1040 = vlog2.pop %v1035
          %v1041 = vmul.f32 %v1040, 0.6931472
          %v1042 = vadd.f32 %v1041, 24.0
          %v1043 = vadd.f32 %v1039, %v1042
          %v1044 = vmax.f32 %v1043, 0.0
          %v1045 = vand.u32 2147483647, %v1043
          %v1046 = vsub.f32 0.0, %v1045
          %v1047 = vmul.f32 %v1046, 1.442695
          %v1048 = vpow.pop %v1047
          %v1049 = vadd.f32 %v1048, 1.0
          %v1050 = vlog2.pop %v1049
          %v1051 = vmul.f32 %v1050, 0.6931472
          %v1052 = vadd.f32 %v1044, %v1051
          %v1053 = vmul.f32 %v1052, 0.041666668
          %vm1054 = vcmp.gt.f32.partialorder %v1024, 0.0
          %vm1055 = vcmp.gt.f32.partialorder %v1036, 0.0
          %vm1056 = vmand %vm1054, %vm1055
          %v1057 = vsel %vm1056, 1, 0
          %v1058 = vcvt.s32.f32 %v1057
          %v1059 = vmul.f32 %v1053, %v1058
          %1060 = vadd.xlane.f32.xlu0 %v1059
          %v1061 = vpop.xlane.xlu0 %1060
          %1062 = vadd.xlane.f32.xlu0 %v1058
          %v1063 = vpop.xlane.xlu0 %1062
          %v1064 = vld [vmem:[#allocation7] sm:$0xff]
          %v1065 = vld [vmem:[#allocation7 + $0x8] sm:$0xff]
          %v1066 = vld [vmem:[#allocation7 + $0x10] sm:$0xff]
          %v1067 = vld [vmem:[#allocation7 + $0x18] sm:$0xff]
          %v1068 = vsel %vm959, %v1064, 0.0
          %v1069 = vsel %vm959, %v1065, 0.0
          %v1070 = vadd.f32 %v1068, %v1069
          %v1071 = vsel %vm959, %v1066, 0.0
          %v1072 = vadd.f32 %v1070, %v1071
          %v1073 = vsel %vm959, %v1067, 0.0
          %v1074 = vadd.f32 %v1072, %v1073
          %v1075 = vrot.slane %v1074, 4
          %v1076 = vadd.f32 %v1074, %v1075
          %v1077 = vrot.slane %v1076, 2
          %v1078 = vadd.f32 %v1076, %v1077
          %v1079 = vrot.slane %v1078, 1
          %v1080 = vadd.f32 %v1078, %v1079
          %v1081 = vld [vmem:[#allocation8] sm:$0xff]
          %v1082 = vld [vmem:[#allocation8 + $0x8] sm:$0xff]
          %v1083 = vld [vmem:[#allocation8 + $0x10] sm:$0xff]
          %v1084 = vld [vmem:[#allocation8 + $0x18] sm:$0xff]
          %v1085 = vsel %vm959, %v1081, 0.0
          %v1086 = vsel %vm959, %v1082, 0.0
          %v1087 = vadd.f32 %v1085, %v1086
          %v1088 = vsel %vm959, %v1083, 0.0
          %v1089 = vadd.f32 %v1087, %v1088
          %v1090 = vsel %vm959, %v1084, 0.0
          %v1091 = vadd.f32 %v1089, %v1090
          %v1092 = vrot.slane %v1091, 4
          %v1093 = vadd.f32 %v1091, %v1092
          %v1094 = vrot.slane %v1093, 2
          %v1095 = vadd.f32 %v1093, %v1094
          %v1096 = vrot.slane %v1095, 1
          %v1097 = vadd.f32 %v1095, %v1096
          %v1098 = vrcp.pop %v1097
          %v1099 = vmul.f32 %v1080, %v1098
          %v1100 = vrcp.pop %v1063
          %v1101 = vmul.f32 %v1061, %v1100
          %v1102 = vadd.f32 %v1099, %v1101
          %v1103 = vmul.f32 %v1102, 0.5
          %vm1104 = vcmask 0
          %1105 = vst.msk [vmem:[#allocation9] sm:$0x1] %vm1104, %v1103
        $region48: #{coarse_matching_loss.1} parent=39 // pred_fallthru
          _
        // Predicated region
        $region49: #{coarse_matching_loss.1} parent=39 // pred_check
          %p1106 = pneg %p140
        $region50: #{coarse_matching_loss.1} parent=39 // pred_check_branch
          %1108 = sbr.rel (%p1106) target = $region52
        $region51: #{coarse_matching_loss.1} parent=39 // pred_region
          %s1110 = ssub.s32 16, 16
          %1111 = vsyncadd [#allocation10], %s1110
          %s1113 = sshll.u32 [#allocation9], 4
          %s1114 = int_to_ptr.vmem [resolvable:$true] %s1113
          %1116 = dma.vmem_to_hbm [thread:$0]  %s1114, 16, %s5, [#allocation10]
        $region52: #{coarse_matching_loss.1} parent=39 // pred_fallthru
          _
        // Predicated region
        $region53: #{coarse_matching_loss.1} parent=39 // pred_check
          %p1117 = pneg %p140
        $region54: #{coarse_matching_loss.1} parent=39 // pred_check_branch
          %1119 = sbr.rel (%p1117) target = $region56
        $region55: #{coarse_matching_loss.1} parent=39 // pred_region
          %1120 = dma.done [#allocation10], 16
        $region56: #{coarse_matching_loss.1} parent=39 // pred_fallthru
          _
      $region40: #{coarse_matching_loss.1} parent=5 // pred_fallthru
        _
      %p1121 = scmp.le.s32.totalorder 2, %s12
      // Predicated region
      $region57: #{coarse_matching_loss.1} parent=5 // pred_check
        %p1122 = pneg %p1121
      $region58: #{coarse_matching_loss.1} parent=5 // pred_check_branch
        %1124 = sbr.rel (%p1122) target = $region60
      $region59: #{coarse_matching_loss.1} parent=5 // pred_region
        %s1125 = ssub.s32 %s12, 2
      $region60: #{coarse_matching_loss.1} parent=5 // pred_fallthru
        _
    $region6: #{coarse_matching_loss.1} parent=1 // loop_footer
      %s16 = sadd.s32 1, %s12
    $region7: #{coarse_matching_loss.1} parent=1 // loop_footer_branch
      %11 = sbr.rel target = $region3
    $region8: #{coarse_matching_loss.1} parent=1 // loop_exit
      _
    %1126 = vsyncpa [#allocation10], 1
    %s1127 = scalar_lea.sflag [#allocation10], 1
    %1128 = vsyncpa %s1127, 1

</llo_original>
